<compile_context>
chip_gen: v7x
topology: tpu7x:2x2x1
jax: 0.10.0
libtpu: 0.0.40
codegen_flags: <defaults>
</compile_context>

<pallas_src>
import functools

import jax
import jax.numpy as jnp
import numpy as np
from jax import lax
from jax.experimental import pallas as pl
from jax.experimental.pallas import tpu as pltpu


def _round_up(n, m):
    return ((n + m - 1) // m) * m


def _pad_to(a, shape):
    cfg = [(0, s - d) for d, s in zip(a.shape, shape)]
    return jnp.pad(a, cfg) if any(p for _, p in cfg) else a


def myrnn_kernel(x_ref, wlin_ref, blin_ref, wih_ref, whh_ref, bih_ref, bhh_ref,
                 wout_ref, bout_ref, out_ref, seq_ref, *, compute_dtype):
    """One batch tile: input Linear -> L-layer tanh RNN -> output Linear.

    Padded shapes:
      x_ref   (T, TB, D) f32 time-major input tile
      wlin    (D, H) bf16     blin (1, H) f32
      wih/whh (L, H, H) bf16  bih/bhh (L, 1, H) f32
      wout    (H, O) bf16     bout (1, O) f32
      out_ref (TB, O) f32
      seq_ref (T, TB, H) f32 scratch: x-path / inter-layer activations
    """
    T, TB, D = x_ref.shape
    H = wlin_ref.shape[1]
    L = wih_ref.shape[0]
    cdt = compute_dtype

    # ---- input Linear: one big matmul over all timesteps --------------------
    # TB % 8 == 0, so the f32 (T, TB, *) <-> (T*TB, *) reshapes are layout
    # no-ops on the (8, 128) tiling (no VMEM copy); cast happens after reshape.
    x2 = x_ref[...].reshape(T * TB, D).astype(cdt)
    z = jnp.dot(x2, wlin_ref[...].astype(cdt),
                preferred_element_type=jnp.float32)
    seq_ref[...] = z.reshape(T, TB, H) + blin_ref[...]          # + b_lin (f32)

    # ---- multi-layer tanh RNN (h0 = 0); layers are a serial dependency ------
    # NOTE: at small TB*H the recurrent state fits in one vreg, so a fori_loop
    # carry is optimal; for large B*H move `h` into a VMEM scratch ref instead.
    h = jnp.zeros((TB, H), jnp.float32)
    for l in range(L):                                 # static layer loop
        wih = wih_ref[l].astype(cdt)                   # (H, H) bf16 (no-op cast)
        whh = whh_ref[l].astype(cdt)                   # (H, H)
        bias = bih_ref[l] + bhh_ref[l]                 # (1, H) f32, hoisted

        # Hoist the input-to-hidden matmul out of the time loop: one large
        # (T*TB, H) @ (H, H) matmul + fused bias, written back in place.
        seq2 = seq_ref[...].reshape(T * TB, H).astype(cdt)
        pre = jnp.dot(seq2, wih, preferred_element_type=jnp.float32)
        seq_ref[...] = pre.reshape(T, TB, H) + bias

        last_layer = (l == L - 1)

        def step(t, h_prev):
            pre_t = seq_ref[t]                         # (TB, H) f32, read first
            h_new = jnp.tanh(
                pre_t + jnp.dot(h_prev.astype(cdt), whh,
                                preferred_element_type=jnp.float32))
            if not last_layer:                         # static: skip on top layer
                seq_ref[t] = h_new                     # feeds the next layer
            return h_new

        # Unrolled so the LLO scheduler overlaps MXU / EUP / stores across steps.
        h = lax.fori_loop(0, T, step, jnp.zeros((TB, H), jnp.float32),
                          unroll=True)

    # ---- output Linear on the last timestep of the top layer ----------------
    out_ref[...] = (jnp.dot(h.astype(cdt), wout_ref[...].astype(cdt),
                            preferred_element_type=jnp.float32)
                    + bout_ref[...])


@functools.partial(jax.jit, static_argnames=("batch_tile", "compute_dtype"))
def myrnn_forward(x, params, *, batch_tile=8, compute_dtype=jnp.bfloat16):
    B, T, D = x.shape
    H = params["w_lin"].shape[1]
    L = params["w_ih"].shape[0]
    O = params["w_out"].shape[1]

    Hp = _round_up(H, 128)          # lane-dense hidden width
    Op = _round_up(O, 128)          # lane-dense output width
    TB = batch_tile                 # sublane-aligned per-grid-step batch tile
    Bp = _round_up(B, TB)
    cdt = compute_dtype

    # Weights as bf16 MXU operands (halves their HBM/VMEM footprint); biases f32.
    w_lin = _pad_to(params["w_lin"], (D, Hp)).astype(cdt)
    b_lin = _pad_to(params["b_lin"].reshape(1, H), (1, Hp))
    w_ih = _pad_to(params["w_ih"], (L, Hp, Hp)).astype(cdt)
    w_hh = _pad_to(params["w_hh"], (L, Hp, Hp)).astype(cdt)
    b_ih = _pad_to(params["b_ih"].reshape(L, 1, H), (L, 1, Hp))
    b_hh = _pad_to(params["b_hh"].reshape(L, 1, H), (L, 1, Hp))
    w_out = _pad_to(params["w_out"], (Hp, Op)).astype(cdt)
    b_out = _pad_to(params["b_out"].reshape(1, O), (1, Op))

    # Time-major, batch padded to the tile; transpose+pad fuse under jit into a
    # single pass over x before the custom call.
    x_tm = _pad_to(jnp.transpose(x, (1, 0, 2)), (T, Bp, D))

    kernel = functools.partial(myrnn_kernel, compute_dtype=cdt)
    out_padded = pl.pallas_call(
        kernel,
        out_shape=jax.ShapeDtypeStruct((Bp, Op), jnp.float32),
        grid=(Bp // TB,),
        in_specs=[
            pl.BlockSpec((T, TB, D), lambda i: (0, i, 0)),       # x (time-major)
            pl.BlockSpec((D, Hp), lambda i: (0, 0)),             # w_lin
            pl.BlockSpec((1, Hp), lambda i: (0, 0)),             # b_lin
            pl.BlockSpec((L, Hp, Hp), lambda i: (0, 0, 0)),      # w_ih
            pl.BlockSpec((L, Hp, Hp), lambda i: (0, 0, 0)),      # w_hh
            pl.BlockSpec((L, 1, Hp), lambda i: (0, 0, 0)),       # b_ih
            pl.BlockSpec((L, 1, Hp), lambda i: (0, 0, 0)),       # b_hh
            pl.BlockSpec((Hp, Op), lambda i: (0, 0)),            # w_out
            pl.BlockSpec((1, Op), lambda i: (0, 0)),             # b_out
        ],
        out_specs=pl.BlockSpec((TB, Op), lambda i: (i, 0)),
        scratch_shapes=[pltpu.VMEM((T, TB, Hp), jnp.float32)],
        compiler_params=pltpu.CompilerParams(
            dimension_semantics=("parallel",),   # batch tiles -> both TCs on v7x
            vmem_limit_bytes=32 * 1024 * 1024,
        ),
    )(x_tm, w_lin, b_lin, w_ih, w_hh, b_ih, b_hh, w_out, b_out)

    return out_padded[:B, :O]


def myrnn_ref(x, params, compute_dtype=jnp.float32):
    """Pure-JAX reference mirroring the PyTorch forward pass.

    `compute_dtype` sets the matmul-operand dtype (accumulation is f32),
    mirroring the kernel's bf16 MXU operands when set to bfloat16.
    """
    cdt = compute_dtype
    B, T, D = x.shape
    H = params["w_lin"].shape[1]
    L = params["w_ih"].shape[0]

    def mm(a, b):
        return jnp.dot(a.astype(cdt), b.astype(cdt),
                       preferred_element_type=jnp.float32)

    z = mm(x.reshape(B * T, D), params["w_lin"]) + params["b_lin"]
    seq = z.reshape(B, T, H)
    for l in range(L):
        h = jnp.zeros((B, H), jnp.float32)
        outs = []
        for t in range(T):
            h = jnp.tanh(mm(seq[:, t], params["w_ih"][l]) + params["b_ih"][l]
                         + mm(h, params["w_hh"][l]) + params["b_hh"][l])
            outs.append(h)
        seq = jnp.stack(outs, axis=1)
    return mm(seq[:, -1, :], params["w_out"]) + params["b_out"]


def init_params(key, input_size, hidden_size, num_layers, output_size):
    """Deterministic PyTorch-style U(-1/sqrt(fan_in), 1/sqrt(fan_in)) init."""
    ks = jax.random.split(key, 9)

    def u(k, shape, fan_in):
        b = 1.0 / np.sqrt(fan_in)
        return jax.random.uniform(k, shape, jnp.float32, -b, b)

    H, L = hidden_size, num_layers
    return {
        # nn.Linear(input_size, H): weight (H, D) -> stored transposed (D, H)
        "w_lin": u(ks[0], (input_size, H), input_size),
        "b_lin": u(ks[1], (1, H), input_size),
        # nn.RNN(H, H, L): per-layer weight_ih/hh (H, H) -> stored transposed
        "w_ih": u(ks[2], (L, H, H), H),
        "w_hh": u(ks[3], (L, H, H), H),
        "b_ih": u(ks[4], (L, H), H),
        "b_hh": u(ks[5], (L, H), H),
        # nn.Linear(H, output_size): weight (O, H) -> stored transposed (H, O)
        "w_out": u(ks[6], (H, output_size), H),
        "b_out": u(ks[7], (1, output_size), H),
    }


if __name__ == "__main__":
    B, T, D, H, L, O = 2, 8, 16, 32, 2, 8
    key = jax.random.PRNGKey(0)
    k_x, k_p = jax.random.split(key)

    x = jax.random.normal(k_x, (B, T, D), jnp.float32)
    params = init_params(k_p, D, H, L, O)

    out = jax.block_until_ready(myrnn_forward(x, params))   # bf16 MXU operands

    # Tight check vs. a matched-precision (bf16 operand, f32 accumulate) ref.
    ref_bf16 = jax.block_until_ready(myrnn_ref(x, params, jnp.bfloat16))
    np.testing.assert_allclose(np.asarray(out), np.asarray(ref_bf16),
                               rtol=2e-3, atol=2e-3)
    # Cross-check vs. the exact f32 PyTorch-semantics ref (bf16 rounding slack).
    ref_f32 = jax.block_until_ready(myrnn_ref(x, params, jnp.float32))
    np.testing.assert_allclose(np.asarray(out), np.asarray(ref_f32),
                               rtol=1e-1, atol=1e-1)
    print("KERNEL_OK")
</pallas_src>

<mosaic_0001>
module attributes {stable_mosaic.version = 11 : i64} {
  func.func @myrnn_kernel(%arg0: i32, %arg1: memref<8x8x16xf32, #tpu.memory_space<vmem>>, %arg2: memref<16x128xbf16, #tpu.memory_space<vmem>>, %arg3: memref<1x128xf32, #tpu.memory_space<vmem>>, %arg4: memref<2x128x128xbf16, #tpu.memory_space<vmem>>, %arg5: memref<2x128x128xbf16, #tpu.memory_space<vmem>>, %arg6: memref<2x1x128xf32, #tpu.memory_space<vmem>>, %arg7: memref<2x1x128xf32, #tpu.memory_space<vmem>>, %arg8: memref<128x128xbf16, #tpu.memory_space<vmem>>, %arg9: memref<1x128xf32, #tpu.memory_space<vmem>>, %arg10: memref<8x128xf32, #tpu.memory_space<vmem>>, %arg11: memref<8x8x128xf32, #tpu.memory_space<vmem>>) attributes {dimension_semantics = [#tpu.dimension_semantics<parallel>], iteration_bounds = array<i64: 1>, scalar_prefetch = 0 : i64, scratch_operands = 1 : i64, tpu.core_type = #tpu.core_type<tc>, window_params = [{transform_indices = @transform_0, window_bounds = array<i64: 8, 8, 16>}, {pipeline_mode = #tpu.pipeline_mode<synchronous>, transform_indices = @transform_1, window_bounds = array<i64: 16, 128>}, {pipeline_mode = #tpu.pipeline_mode<synchronous>, transform_indices = @transform_2, window_bounds = array<i64: 1, 128>}, {pipeline_mode = #tpu.pipeline_mode<synchronous>, transform_indices = @transform_3, window_bounds = array<i64: 2, 128, 128>}, {pipeline_mode = #tpu.pipeline_mode<synchronous>, transform_indices = @transform_4, window_bounds = array<i64: 2, 128, 128>}, {pipeline_mode = #tpu.pipeline_mode<synchronous>, transform_indices = @transform_5, window_bounds = array<i64: 2, 1, 128>}, {pipeline_mode = #tpu.pipeline_mode<synchronous>, transform_indices = @transform_6, window_bounds = array<i64: 2, 1, 128>}, {pipeline_mode = #tpu.pipeline_mode<synchronous>, transform_indices = @transform_7, window_bounds = array<i64: 128, 128>}, {pipeline_mode = #tpu.pipeline_mode<synchronous>, transform_indices = @transform_8, window_bounds = array<i64: 1, 128>}, {transform_indices = @transform_9, window_bounds = array<i64: 8, 128>}]} {
    %c0 = arith.constant 0 : index
    %c0_0 = arith.constant 0 : index
    %c0_1 = arith.constant 0 : index
    %0 = vector.load %arg1[%c0, %c0_0, %c0_1] : memref<8x8x16xf32, #tpu.memory_space<vmem>>, vector<8x8x16xf32>
    %1 = vector.shape_cast %0 : vector<8x8x16xf32> to vector<64x16xf32>
    %2 = arith.truncf %1 : vector<64x16xf32> to vector<64x16xbf16>
    %c0_2 = arith.constant 0 : index
    %c0_3 = arith.constant 0 : index
    %3 = vector.load %arg2[%c0_2, %c0_3] : memref<16x128xbf16, #tpu.memory_space<vmem>>, vector<16x128xbf16>
    %cst = arith.constant dense<0.000000e+00> : vector<64x128xf32>
    %4 = tpu.matmul %2, %3, %cst {dimension_numbers = #tpu.dot_dimension_numbers<[1], [0], [0], [1], [0, 0, 1, 1], [], []>} : vector<64x16xbf16>, vector<16x128xbf16>, vector<64x128xf32> -> vector<64x128xf32>
    %5 = vector.shape_cast %4 : vector<64x128xf32> to vector<8x8x128xf32>
    %c0_4 = arith.constant 0 : index
    %c0_5 = arith.constant 0 : index
    %6 = vector.load %arg3[%c0_4, %c0_5] : memref<1x128xf32, #tpu.memory_space<vmem>>, vector<1x128xf32>
    %7 = vector.shape_cast %6 : vector<1x128xf32> to vector<1x1x128xf32>
    %8 = vector.broadcast %7 : vector<1x1x128xf32> to vector<8x8x128xf32>
    %9 = arith.addf %5, %8 : vector<8x8x128xf32>
    %c0_6 = arith.constant 0 : index
    %c0_7 = arith.constant 0 : index
    %c0_8 = arith.constant 0 : index
    %10 = vector.load %arg11[%c0_6, %c0_7, %c0_8] : memref<8x8x128xf32, #tpu.memory_space<vmem>>, vector<8x8x128xf32>
    tpu.vector_store %arg11[%c0_6, %c0_7, %c0_8], %9 {strides = array<i32>} : memref<8x8x128xf32, #tpu.memory_space<vmem>>, vector<8x8x128xf32>,
    %c0_9 = arith.constant 0 : index
    %c0_10 = arith.constant 0 : index
    %c0_11 = arith.constant 0 : index
    %11 = vector.load %arg4[%c0_9, %c0_10, %c0_11] : memref<2x128x128xbf16, #tpu.memory_space<vmem>>, vector<1x128x128xbf16>
    %12 = vector.shape_cast %11 : vector<1x128x128xbf16> to vector<128x128xbf16>
    %c0_12 = arith.constant 0 : index
    %c0_13 = arith.constant 0 : index
    %c0_14 = arith.constant 0 : index
    %13 = vector.load %arg5[%c0_12, %c0_13, %c0_14] : memref<2x128x128xbf16, #tpu.memory_space<vmem>>, vector<1x128x128xbf16>
    %14 = vector.shape_cast %13 : vector<1x128x128xbf16> to vector<128x128xbf16>
    %c0_15 = arith.constant 0 : index
    %c0_16 = arith.constant 0 : index
    %c0_17 = arith.constant 0 : index
    %15 = vector.load %arg6[%c0_15, %c0_16, %c0_17] : memref<2x1x128xf32, #tpu.memory_space<vmem>>, vector<1x1x128xf32>
    %16 = vector.shape_cast %15 : vector<1x1x128xf32> to vector<1x128xf32>
    %c0_18 = arith.constant 0 : index
    %c0_19 = arith.constant 0 : index
    %c0_20 = arith.constant 0 : index
    %17 = vector.load %arg7[%c0_18, %c0_19, %c0_20] : memref<2x1x128xf32, #tpu.memory_space<vmem>>, vector<1x1x128xf32>
    %18 = vector.shape_cast %17 : vector<1x1x128xf32> to vector<1x128xf32>
    %19 = arith.addf %16, %18 : vector<1x128xf32>
    %c0_21 = arith.constant 0 : index
    %c0_22 = arith.constant 0 : index
    %c0_23 = arith.constant 0 : index
    %20 = vector.load %arg11[%c0_21, %c0_22, %c0_23] : memref<8x8x128xf32, #tpu.memory_space<vmem>>, vector<8x8x128xf32>
    %21 = vector.shape_cast %20 : vector<8x8x128xf32> to vector<64x128xf32>
    %22 = arith.truncf %21 : vector<64x128xf32> to vector<64x128xbf16>
    %cst_24 = arith.constant dense<0.000000e+00> : vector<64x128xf32>
    %23 = tpu.matmul %22, %12, %cst_24 {dimension_numbers = #tpu.dot_dimension_numbers<[1], [0], [0], [1], [0, 0, 1, 1], [], []>} : vector<64x128xbf16>, vector<128x128xbf16>, vector<64x128xf32> -> vector<64x128xf32>
    %24 = vector.shape_cast %23 : vector<64x128xf32> to vector<8x8x128xf32>
    %25 = vector.shape_cast %19 : vector<1x128xf32> to vector<1x1x128xf32>
    %26 = vector.broadcast %25 : vector<1x1x128xf32> to vector<8x8x128xf32>
    %27 = arith.addf %24, %26 : vector<8x8x128xf32>
    %c0_25 = arith.constant 0 : index
    %c0_26 = arith.constant 0 : index
    %c0_27 = arith.constant 0 : index
    %28 = vector.load %arg11[%c0_25, %c0_26, %c0_27] : memref<8x8x128xf32, #tpu.memory_space<vmem>>, vector<8x8x128xf32>
    tpu.vector_store %arg11[%c0_25, %c0_26, %c0_27], %27 {strides = array<i32>} : memref<8x8x128xf32, #tpu.memory_space<vmem>>, vector<8x8x128xf32>,
    %cst_28 = arith.constant 0.000000e+00 : f32
    %29 = vector.broadcast %cst_28 : f32 to vector<8x128xf32>
    %c0_i32 = arith.constant 0 : i32
    %30 = arith.index_cast %c0_i32 : i32 to index
    %c0_29 = arith.constant 0 : index
    %c0_30 = arith.constant 0 : index
    %31 = vector.load %arg11[%30, %c0_29, %c0_30] : memref<8x8x128xf32, #tpu.memory_space<vmem>>, vector<1x8x128xf32>
    %32 = vector.shape_cast %31 : vector<1x8x128xf32> to vector<8x128xf32>
    %33 = arith.truncf %29 : vector<8x128xf32> to vector<8x128xbf16>
    %cst_31 = arith.constant dense<0.000000e+00> : vector<8x128xf32>
    %34 = tpu.matmul %33, %14, %cst_31 {dimension_numbers = #tpu.dot_dimension_numbers<[1], [0], [0], [1], [0, 0, 1, 1], [], []>} : vector<8x128xbf16>, vector<128x128xbf16>, vector<8x128xf32> -> vector<8x128xf32>
    %35 = arith.addf %32, %34 : vector<8x128xf32>
    %36 = math.tanh %35 : vector<8x128xf32>
    %37 = arith.index_cast %c0_i32 : i32 to index
    %c0_32 = arith.constant 0 : index
    %c0_33 = arith.constant 0 : index
    %38 = vector.load %arg11[%37, %c0_32, %c0_33] : memref<8x8x128xf32, #tpu.memory_space<vmem>>, vector<1x8x128xf32>
    %39 = vector.shape_cast %38 : vector<1x8x128xf32> to vector<8x128xf32>
    %40 = vector.shape_cast %36 : vector<8x128xf32> to vector<1x8x128xf32>
    tpu.vector_store %arg11[%37, %c0_32, %c0_33], %40 {strides = array<i32>} : memref<8x8x128xf32, #tpu.memory_space<vmem>>, vector<1x8x128xf32>,
    %c1_i32 = arith.constant 1 : i32
    %41 = arith.index_cast %c1_i32 : i32 to index
    %c0_34 = arith.constant 0 : index
    %c0_35 = arith.constant 0 : index
    %42 = vector.load %arg11[%41, %c0_34, %c0_35] : memref<8x8x128xf32, #tpu.memory_space<vmem>>, vector<1x8x128xf32>
    %43 = vector.shape_cast %42 : vector<1x8x128xf32> to vector<8x128xf32>
    %44 = arith.truncf %36 : vector<8x128xf32> to vector<8x128xbf16>
    %cst_36 = arith.constant dense<0.000000e+00> : vector<8x128xf32>
    %45 = tpu.matmul %44, %14, %cst_36 {dimension_numbers = #tpu.dot_dimension_numbers<[1], [0], [0], [1], [0, 0, 1, 1], [], []>} : vector<8x128xbf16>, vector<128x128xbf16>, vector<8x128xf32> -> vector<8x128xf32>
    %46 = arith.addf %43, %45 : vector<8x128xf32>
    %47 = math.tanh %46 : vector<8x128xf32>
    %48 = arith.index_cast %c1_i32 : i32 to index
    %c0_37 = arith.constant 0 : index
    %c0_38 = arith.constant 0 : index
    %49 = vector.load %arg11[%48, %c0_37, %c0_38] : memref<8x8x128xf32, #tpu.memory_space<vmem>>, vector<1x8x128xf32>
    %50 = vector.shape_cast %49 : vector<1x8x128xf32> to vector<8x128xf32>
    %51 = vector.shape_cast %47 : vector<8x128xf32> to vector<1x8x128xf32>
    tpu.vector_store %arg11[%48, %c0_37, %c0_38], %51 {strides = array<i32>} : memref<8x8x128xf32, #tpu.memory_space<vmem>>, vector<1x8x128xf32>,
    %c2_i32 = arith.constant 2 : i32
    %52 = arith.index_cast %c2_i32 : i32 to index
    %c0_39 = arith.constant 0 : index
    %c0_40 = arith.constant 0 : index
    %53 = vector.load %arg11[%52, %c0_39, %c0_40] : memref<8x8x128xf32, #tpu.memory_space<vmem>>, vector<1x8x128xf32>
    %54 = vector.shape_cast %53 : vector<1x8x128xf32> to vector<8x128xf32>
    %55 = arith.truncf %47 : vector<8x128xf32> to vector<8x128xbf16>
    %cst_41 = arith.constant dense<0.000000e+00> : vector<8x128xf32>
    %56 = tpu.matmul %55, %14, %cst_41 {dimension_numbers = #tpu.dot_dimension_numbers<[1], [0], [0], [1], [0, 0, 1, 1], [], []>} : vector<8x128xbf16>, vector<128x128xbf16>, vector<8x128xf32> -> vector<8x128xf32>
    %57 = arith.addf %54, %56 : vector<8x128xf32>
    %58 = math.tanh %57 : vector<8x128xf32>
    %59 = arith.index_cast %c2_i32 : i32 to index
    %c0_42 = arith.constant 0 : index
    %c0_43 = arith.constant 0 : index
    %60 = vector.load %arg11[%59, %c0_42, %c0_43] : memref<8x8x128xf32, #tpu.memory_space<vmem>>, vector<1x8x128xf32>
    %61 = vector.shape_cast %60 : vector<1x8x128xf32> to vector<8x128xf32>
    %62 = vector.shape_cast %58 : vector<8x128xf32> to vector<1x8x128xf32>
    tpu.vector_store %arg11[%59, %c0_42, %c0_43], %62 {strides = array<i32>} : memref<8x8x128xf32, #tpu.memory_space<vmem>>, vector<1x8x128xf32>,
    %c3_i32 = arith.constant 3 : i32
    %63 = arith.index_cast %c3_i32 : i32 to index
    %c0_44 = arith.constant 0 : index
    %c0_45 = arith.constant 0 : index
    %64 = vector.load %arg11[%63, %c0_44, %c0_45] : memref<8x8x128xf32, #tpu.memory_space<vmem>>, vector<1x8x128xf32>
    %65 = vector.shape_cast %64 : vector<1x8x128xf32> to vector<8x128xf32>
    %66 = arith.truncf %58 : vector<8x128xf32> to vector<8x128xbf16>
    %cst_46 = arith.constant dense<0.000000e+00> : vector<8x128xf32>
    %67 = tpu.matmul %66, %14, %cst_46 {dimension_numbers = #tpu.dot_dimension_numbers<[1], [0], [0], [1], [0, 0, 1, 1], [], []>} : vector<8x128xbf16>, vector<128x128xbf16>, vector<8x128xf32> -> vector<8x128xf32>
    %68 = arith.addf %65, %67 : vector<8x128xf32>
    %69 = math.tanh %68 : vector<8x128xf32>
    %70 = arith.index_cast %c3_i32 : i32 to index
    %c0_47 = arith.constant 0 : index
    %c0_48 = arith.constant 0 : index
    %71 = vector.load %arg11[%70, %c0_47, %c0_48] : memref<8x8x128xf32, #tpu.memory_space<vmem>>, vector<1x8x128xf32>
    %72 = vector.shape_cast %71 : vector<1x8x128xf32> to vector<8x128xf32>
    %73 = vector.shape_cast %69 : vector<8x128xf32> to vector<1x8x128xf32>
    tpu.vector_store %arg11[%70, %c0_47, %c0_48], %73 {strides = array<i32>} : memref<8x8x128xf32, #tpu.memory_space<vmem>>, vector<1x8x128xf32>,
    %c4_i32 = arith.constant 4 : i32
    %74 = arith.index_cast %c4_i32 : i32 to index
    %c0_49 = arith.constant 0 : index
    %c0_50 = arith.constant 0 : index
    %75 = vector.load %arg11[%74, %c0_49, %c0_50] : memref<8x8x128xf32, #tpu.memory_space<vmem>>, vector<1x8x128xf32>
    %76 = vector.shape_cast %75 : vector<1x8x128xf32> to vector<8x128xf32>
    %77 = arith.truncf %69 : vector<8x128xf32> to vector<8x128xbf16>
    %cst_51 = arith.constant dense<0.000000e+00> : vector<8x128xf32>
    %78 = tpu.matmul %77, %14, %cst_51 {dimension_numbers = #tpu.dot_dimension_numbers<[1], [0], [0], [1], [0, 0, 1, 1], [], []>} : vector<8x128xbf16>, vector<128x128xbf16>, vector<8x128xf32> -> vector<8x128xf32>
    %79 = arith.addf %76, %78 : vector<8x128xf32>
    %80 = math.tanh %79 : vector<8x128xf32>
    %81 = arith.index_cast %c4_i32 : i32 to index
    %c0_52 = arith.constant 0 : index
    %c0_53 = arith.constant 0 : index
    %82 = vector.load %arg11[%81, %c0_52, %c0_53] : memref<8x8x128xf32, #tpu.memory_space<vmem>>, vector<1x8x128xf32>
    %83 = vector.shape_cast %82 : vector<1x8x128xf32> to vector<8x128xf32>
    %84 = vector.shape_cast %80 : vector<8x128xf32> to vector<1x8x128xf32>
    tpu.vector_store %arg11[%81, %c0_52, %c0_53], %84 {strides = array<i32>} : memref<8x8x128xf32, #tpu.memory_space<vmem>>, vector<1x8x128xf32>,
    %c5_i32 = arith.constant 5 : i32
    %85 = arith.index_cast %c5_i32 : i32 to index
    %c0_54 = arith.constant 0 : index
    %c0_55 = arith.constant 0 : index
    %86 = vector.load %arg11[%85, %c0_54, %c0_55] : memref<8x8x128xf32, #tpu.memory_space<vmem>>, vector<1x8x128xf32>
    %87 = vector.shape_cast %86 : vector<1x8x128xf32> to vector<8x128xf32>
    %88 = arith.truncf %80 : vector<8x128xf32> to vector<8x128xbf16>
    %cst_56 = arith.constant dense<0.000000e+00> : vector<8x128xf32>
    %89 = tpu.matmul %88, %14, %cst_56 {dimension_numbers = #tpu.dot_dimension_numbers<[1], [0], [0], [1], [0, 0, 1, 1], [], []>} : vector<8x128xbf16>, vector<128x128xbf16>, vector<8x128xf32> -> vector<8x128xf32>
    %90 = arith.addf %87, %89 : vector<8x128xf32>
    %91 = math.tanh %90 : vector<8x128xf32>
    %92 = arith.index_cast %c5_i32 : i32 to index
    %c0_57 = arith.constant 0 : index
    %c0_58 = arith.constant 0 : index
    %93 = vector.load %arg11[%92, %c0_57, %c0_58] : memref<8x8x128xf32, #tpu.memory_space<vmem>>, vector<1x8x128xf32>
    %94 = vector.shape_cast %93 : vector<1x8x128xf32> to vector<8x128xf32>
    %95 = vector.shape_cast %91 : vector<8x128xf32> to vector<1x8x128xf32>
    tpu.vector_store %arg11[%92, %c0_57, %c0_58], %95 {strides = array<i32>} : memref<8x8x128xf32, #tpu.memory_space<vmem>>, vector<1x8x128xf32>,
    %c6_i32 = arith.constant 6 : i32
    %96 = arith.index_cast %c6_i32 : i32 to index
    %c0_59 = arith.constant 0 : index
    %c0_60 = arith.constant 0 : index
    %97 = vector.load %arg11[%96, %c0_59, %c0_60] : memref<8x8x128xf32, #tpu.memory_space<vmem>>, vector<1x8x128xf32>
    %98 = vector.shape_cast %97 : vector<1x8x128xf32> to vector<8x128xf32>
    %99 = arith.truncf %91 : vector<8x128xf32> to vector<8x128xbf16>
    %cst_61 = arith.constant dense<0.000000e+00> : vector<8x128xf32>
    %100 = tpu.matmul %99, %14, %cst_61 {dimension_numbers = #tpu.dot_dimension_numbers<[1], [0], [0], [1], [0, 0, 1, 1], [], []>} : vector<8x128xbf16>, vector<128x128xbf16>, vector<8x128xf32> -> vector<8x128xf32>
    %101 = arith.addf %98, %100 : vector<8x128xf32>
    %102 = math.tanh %101 : vector<8x128xf32>
    %103 = arith.index_cast %c6_i32 : i32 to index
    %c0_62 = arith.constant 0 : index
    %c0_63 = arith.constant 0 : index
    %104 = vector.load %arg11[%103, %c0_62, %c0_63] : memref<8x8x128xf32, #tpu.memory_space<vmem>>, vector<1x8x128xf32>
    %105 = vector.shape_cast %104 : vector<1x8x128xf32> to vector<8x128xf32>
    %106 = vector.shape_cast %102 : vector<8x128xf32> to vector<1x8x128xf32>
    tpu.vector_store %arg11[%103, %c0_62, %c0_63], %106 {strides = array<i32>} : memref<8x8x128xf32, #tpu.memory_space<vmem>>, vector<1x8x128xf32>,
    %c7_i32 = arith.constant 7 : i32
    %107 = arith.index_cast %c7_i32 : i32 to index
    %c0_64 = arith.constant 0 : index
    %c0_65 = arith.constant 0 : index
    %108 = vector.load %arg11[%107, %c0_64, %c0_65] : memref<8x8x128xf32, #tpu.memory_space<vmem>>, vector<1x8x128xf32>
    %109 = vector.shape_cast %108 : vector<1x8x128xf32> to vector<8x128xf32>
    %110 = arith.truncf %102 : vector<8x128xf32> to vector<8x128xbf16>
    %cst_66 = arith.constant dense<0.000000e+00> : vector<8x128xf32>
    %111 = tpu.matmul %110, %14, %cst_66 {dimension_numbers = #tpu.dot_dimension_numbers<[1], [0], [0], [1], [0, 0, 1, 1], [], []>} : vector<8x128xbf16>, vector<128x128xbf16>, vector<8x128xf32> -> vector<8x128xf32>
    %112 = arith.addf %109, %111 : vector<8x128xf32>
    %113 = math.tanh %112 : vector<8x128xf32>
    %114 = arith.index_cast %c7_i32 : i32 to index
    %c0_67 = arith.constant 0 : index
    %c0_68 = arith.constant 0 : index
    %115 = vector.load %arg11[%114, %c0_67, %c0_68] : memref<8x8x128xf32, #tpu.memory_space<vmem>>, vector<1x8x128xf32>
    %116 = vector.shape_cast %115 : vector<1x8x128xf32> to vector<8x128xf32>
    %117 = vector.shape_cast %113 : vector<8x128xf32> to vector<1x8x128xf32>
    tpu.vector_store %arg11[%114, %c0_67, %c0_68], %117 {strides = array<i32>} : memref<8x8x128xf32, #tpu.memory_space<vmem>>, vector<1x8x128xf32>,
    %c8_i32 = arith.constant 8 : i32
    %c1 = arith.constant 1 : index
    %c0_69 = arith.constant 0 : index
    %c0_70 = arith.constant 0 : index
    %118 = vector.load %arg4[%c1, %c0_69, %c0_70] : memref<2x128x128xbf16, #tpu.memory_space<vmem>>, vector<1x128x128xbf16>
    %119 = vector.shape_cast %118 : vector<1x128x128xbf16> to vector<128x128xbf16>
    %c1_71 = arith.constant 1 : index
    %c0_72 = arith.constant 0 : index
    %c0_73 = arith.constant 0 : index
    %120 = vector.load %arg5[%c1_71, %c0_72, %c0_73] : memref<2x128x128xbf16, #tpu.memory_space<vmem>>, vector<1x128x128xbf16>
    %121 = vector.shape_cast %120 : vector<1x128x128xbf16> to vector<128x128xbf16>
    %c1_74 = arith.constant 1 : index
    %c0_75 = arith.constant 0 : index
    %c0_76 = arith.constant 0 : index
    %122 = vector.load %arg6[%c1_74, %c0_75, %c0_76] : memref<2x1x128xf32, #tpu.memory_space<vmem>>, vector<1x1x128xf32>
    %123 = vector.shape_cast %122 : vector<1x1x128xf32> to vector<1x128xf32>
    %c1_77 = arith.constant 1 : index
    %c0_78 = arith.constant 0 : index
    %c0_79 = arith.constant 0 : index
    %124 = vector.load %arg7[%c1_77, %c0_78, %c0_79] : memref<2x1x128xf32, #tpu.memory_space<vmem>>, vector<1x1x128xf32>
    %125 = vector.shape_cast %124 : vector<1x1x128xf32> to vector<1x128xf32>
    %126 = arith.addf %123, %125 : vector<1x128xf32>
    %c0_80 = arith.constant 0 : index
    %c0_81 = arith.constant 0 : index
    %c0_82 = arith.constant 0 : index
    %127 = vector.load %arg11[%c0_80, %c0_81, %c0_82] : memref<8x8x128xf32, #tpu.memory_space<vmem>>, vector<8x8x128xf32>
    %128 = vector.shape_cast %127 : vector<8x8x128xf32> to vector<64x128xf32>
    %129 = arith.truncf %128 : vector<64x128xf32> to vector<64x128xbf16>
    %cst_83 = arith.constant dense<0.000000e+00> : vector<64x128xf32>
    %130 = tpu.matmul %129, %119, %cst_83 {dimension_numbers = #tpu.dot_dimension_numbers<[1], [0], [0], [1], [0, 0, 1, 1], [], []>} : vector<64x128xbf16>, vector<128x128xbf16>, vector<64x128xf32> -> vector<64x128xf32>
    %131 = vector.shape_cast %130 : vector<64x128xf32> to vector<8x8x128xf32>
    %132 = vector.shape_cast %126 : vector<1x128xf32> to vector<1x1x128xf32>
    %133 = vector.broadcast %132 : vector<1x1x128xf32> to vector<8x8x128xf32>
    %134 = arith.addf %131, %133 : vector<8x8x128xf32>
    %c0_84 = arith.constant 0 : index
    %c0_85 = arith.constant 0 : index
    %c0_86 = arith.constant 0 : index
    %135 = vector.load %arg11[%c0_84, %c0_85, %c0_86] : memref<8x8x128xf32, #tpu.memory_space<vmem>>, vector<8x8x128xf32>
    tpu.vector_store %arg11[%c0_84, %c0_85, %c0_86], %134 {strides = array<i32>} : memref<8x8x128xf32, #tpu.memory_space<vmem>>, vector<8x8x128xf32>,
    %cst_87 = arith.constant 0.000000e+00 : f32
    %136 = vector.broadcast %cst_87 : f32 to vector<8x128xf32>
    %c0_i32_88 = arith.constant 0 : i32
    %137 = arith.index_cast %c0_i32_88 : i32 to index
    %c0_89 = arith.constant 0 : index
    %c0_90 = arith.constant 0 : index
    %138 = vector.load %arg11[%137, %c0_89, %c0_90] : memref<8x8x128xf32, #tpu.memory_space<vmem>>, vector<1x8x128xf32>
    %139 = vector.shape_cast %138 : vector<1x8x128xf32> to vector<8x128xf32>
    %140 = arith.truncf %136 : vector<8x128xf32> to vector<8x128xbf16>
    %cst_91 = arith.constant dense<0.000000e+00> : vector<8x128xf32>
    %141 = tpu.matmul %140, %121, %cst_91 {dimension_numbers = #tpu.dot_dimension_numbers<[1], [0], [0], [1], [0, 0, 1, 1], [], []>} : vector<8x128xbf16>, vector<128x128xbf16>, vector<8x128xf32> -> vector<8x128xf32>
    %142 = arith.addf %139, %141 : vector<8x128xf32>
    %143 = math.tanh %142 : vector<8x128xf32>
    %c1_i32_92 = arith.constant 1 : i32
    %144 = arith.index_cast %c1_i32_92 : i32 to index
    %c0_93 = arith.constant 0 : index
    %c0_94 = arith.constant 0 : index
    %145 = vector.load %arg11[%144, %c0_93, %c0_94] : memref<8x8x128xf32, #tpu.memory_space<vmem>>, vector<1x8x128xf32>
    %146 = vector.shape_cast %145 : vector<1x8x128xf32> to vector<8x128xf32>
    %147 = arith.truncf %143 : vector<8x128xf32> to vector<8x128xbf16>
    %cst_95 = arith.constant dense<0.000000e+00> : vector<8x128xf32>
    %148 = tpu.matmul %147, %121, %cst_95 {dimension_numbers = #tpu.dot_dimension_numbers<[1], [0], [0], [1], [0, 0, 1, 1], [], []>} : vector<8x128xbf16>, vector<128x128xbf16>, vector<8x128xf32> -> vector<8x128xf32>
    %149 = arith.addf %146, %148 : vector<8x128xf32>
    %150 = math.tanh %149 : vector<8x128xf32>
    %c2_i32_96 = arith.constant 2 : i32
    %151 = arith.index_cast %c2_i32_96 : i32 to index
    %c0_97 = arith.constant 0 : index
    %c0_98 = arith.constant 0 : index
    %152 = vector.load %arg11[%151, %c0_97, %c0_98] : memref<8x8x128xf32, #tpu.memory_space<vmem>>, vector<1x8x128xf32>
    %153 = vector.shape_cast %152 : vector<1x8x128xf32> to vector<8x128xf32>
    %154 = arith.truncf %150 : vector<8x128xf32> to vector<8x128xbf16>
    %cst_99 = arith.constant dense<0.000000e+00> : vector<8x128xf32>
    %155 = tpu.matmul %154, %121, %cst_99 {dimension_numbers = #tpu.dot_dimension_numbers<[1], [0], [0], [1], [0, 0, 1, 1], [], []>} : vector<8x128xbf16>, vector<128x128xbf16>, vector<8x128xf32> -> vector<8x128xf32>
    %156 = arith.addf %153, %155 : vector<8x128xf32>
    %157 = math.tanh %156 : vector<8x128xf32>
    %c3_i32_100 = arith.constant 3 : i32
    %158 = arith.index_cast %c3_i32_100 : i32 to index
    %c0_101 = arith.constant 0 : index
    %c0_102 = arith.constant 0 : index
    %159 = vector.load %arg11[%158, %c0_101, %c0_102] : memref<8x8x128xf32, #tpu.memory_space<vmem>>, vector<1x8x128xf32>
    %160 = vector.shape_cast %159 : vector<1x8x128xf32> to vector<8x128xf32>
    %161 = arith.truncf %157 : vector<8x128xf32> to vector<8x128xbf16>
    %cst_103 = arith.constant dense<0.000000e+00> : vector<8x128xf32>
    %162 = tpu.matmul %161, %121, %cst_103 {dimension_numbers = #tpu.dot_dimension_numbers<[1], [0], [0], [1], [0, 0, 1, 1], [], []>} : vector<8x128xbf16>, vector<128x128xbf16>, vector<8x128xf32> -> vector<8x128xf32>
    %163 = arith.addf %160, %162 : vector<8x128xf32>
    %164 = math.tanh %163 : vector<8x128xf32>
    %c4_i32_104 = arith.constant 4 : i32
    %165 = arith.index_cast %c4_i32_104 : i32 to index
    %c0_105 = arith.constant 0 : index
    %c0_106 = arith.constant 0 : index
    %166 = vector.load %arg11[%165, %c0_105, %c0_106] : memref<8x8x128xf32, #tpu.memory_space<vmem>>, vector<1x8x128xf32>
    %167 = vector.shape_cast %166 : vector<1x8x128xf32> to vector<8x128xf32>
    %168 = arith.truncf %164 : vector<8x128xf32> to vector<8x128xbf16>
    %cst_107 = arith.constant dense<0.000000e+00> : vector<8x128xf32>
    %169 = tpu.matmul %168, %121, %cst_107 {dimension_numbers = #tpu.dot_dimension_numbers<[1], [0], [0], [1], [0, 0, 1, 1], [], []>} : vector<8x128xbf16>, vector<128x128xbf16>, vector<8x128xf32> -> vector<8x128xf32>
    %170 = arith.addf %167, %169 : vector<8x128xf32>
    %171 = math.tanh %170 : vector<8x128xf32>
    %c5_i32_108 = arith.constant 5 : i32
    %172 = arith.index_cast %c5_i32_108 : i32 to index
    %c0_109 = arith.constant 0 : index
    %c0_110 = arith.constant 0 : index
    %173 = vector.load %arg11[%172, %c0_109, %c0_110] : memref<8x8x128xf32, #tpu.memory_space<vmem>>, vector<1x8x128xf32>
    %174 = vector.shape_cast %173 : vector<1x8x128xf32> to vector<8x128xf32>
    %175 = arith.truncf %171 : vector<8x128xf32> to vector<8x128xbf16>
    %cst_111 = arith.constant dense<0.000000e+00> : vector<8x128xf32>
    %176 = tpu.matmul %175, %121, %cst_111 {dimension_numbers = #tpu.dot_dimension_numbers<[1], [0], [0], [1], [0, 0, 1, 1], [], []>} : vector<8x128xbf16>, vector<128x128xbf16>, vector<8x128xf32> -> vector<8x128xf32>
    %177 = arith.addf %174, %176 : vector<8x128xf32>
    %178 = math.tanh %177 : vector<8x128xf32>
    %c6_i32_112 = arith.constant 6 : i32
    %179 = arith.index_cast %c6_i32_112 : i32 to index
    %c0_113 = arith.constant 0 : index
    %c0_114 = arith.constant 0 : index
    %180 = vector.load %arg11[%179, %c0_113, %c0_114] : memref<8x8x128xf32, #tpu.memory_space<vmem>>, vector<1x8x128xf32>
    %181 = vector.shape_cast %180 : vector<1x8x128xf32> to vector<8x128xf32>
    %182 = arith.truncf %178 : vector<8x128xf32> to vector<8x128xbf16>
    %cst_115 = arith.constant dense<0.000000e+00> : vector<8x128xf32>
    %183 = tpu.matmul %182, %121, %cst_115 {dimension_numbers = #tpu.dot_dimension_numbers<[1], [0], [0], [1], [0, 0, 1, 1], [], []>} : vector<8x128xbf16>, vector<128x128xbf16>, vector<8x128xf32> -> vector<8x128xf32>
    %184 = arith.addf %181, %183 : vector<8x128xf32>
    %185 = math.tanh %184 : vector<8x128xf32>
    %c7_i32_116 = arith.constant 7 : i32
    %186 = arith.index_cast %c7_i32_116 : i32 to index
    %c0_117 = arith.constant 0 : index
    %c0_118 = arith.constant 0 : index
    %187 = vector.load %arg11[%186, %c0_117, %c0_118] : memref<8x8x128xf32, #tpu.memory_space<vmem>>, vector<1x8x128xf32>
    %188 = vector.shape_cast %187 : vector<1x8x128xf32> to vector<8x128xf32>
    %189 = arith.truncf %185 : vector<8x128xf32> to vector<8x128xbf16>
    %cst_119 = arith.constant dense<0.000000e+00> : vector<8x128xf32>
    %190 = tpu.matmul %189, %121, %cst_119 {dimension_numbers = #tpu.dot_dimension_numbers<[1], [0], [0], [1], [0, 0, 1, 1], [], []>} : vector<8x128xbf16>, vector<128x128xbf16>, vector<8x128xf32> -> vector<8x128xf32>
    %191 = arith.addf %188, %190 : vector<8x128xf32>
    %192 = math.tanh %191 : vector<8x128xf32>
    %c8_i32_120 = arith.constant 8 : i32
    %193 = arith.truncf %192 : vector<8x128xf32> to vector<8x128xbf16>
    %c0_121 = arith.constant 0 : index
    %c0_122 = arith.constant 0 : index
    %194 = vector.load %arg8[%c0_121, %c0_122] : memref<128x128xbf16, #tpu.memory_space<vmem>>, vector<128x128xbf16>
    %cst_123 = arith.constant dense<0.000000e+00> : vector<8x128xf32>
    %195 = tpu.matmul %193, %194, %cst_123 {dimension_numbers = #tpu.dot_dimension_numbers<[1], [0], [0], [1], [0, 0, 1, 1], [], []>} : vector<8x128xbf16>, vector<128x128xbf16>, vector<8x128xf32> -> vector<8x128xf32>
    %c0_124 = arith.constant 0 : index
    %c0_125 = arith.constant 0 : index
    %196 = vector.load %arg9[%c0_124, %c0_125] : memref<1x128xf32, #tpu.memory_space<vmem>>, vector<1x128xf32>
    %197 = vector.broadcast %196 : vector<1x128xf32> to vector<8x128xf32>
    %198 = arith.addf %195, %197 : vector<8x128xf32>
    %c0_126 = arith.constant 0 : index
    %c0_127 = arith.constant 0 : index
    %199 = vector.load %arg10[%c0_126, %c0_127] : memref<8x128xf32, #tpu.memory_space<vmem>>, vector<8x128xf32>
    tpu.vector_store %arg10[%c0_126, %c0_127], %198 {strides = array<i32>} : memref<8x128xf32, #tpu.memory_space<vmem>>, vector<8x128xf32>,
    return
  }
  func.func @transform_0(%arg0: i32) -> (i32, i32, i32) {
    %c0_i32 = arith.constant 0 : i32
    %c0_i32_0 = arith.constant 0 : i32
    %c0_i32_1 = arith.constant 0 : i32
    return %c0_i32, %arg0, %c0_i32_0 : i32, i32, i32
  }
  func.func @transform_1(%arg0: i32) -> (i32, i32) {
    %c0_i32 = arith.constant 0 : i32
    %c0_i32_0 = arith.constant 0 : i32
    %c0_i32_1 = arith.constant 0 : i32
    return %c0_i32, %c0_i32_0 : i32, i32
  }
  func.func @transform_2(%arg0: i32) -> (i32, i32) {
    %c0_i32 = arith.constant 0 : i32
    %c0_i32_0 = arith.constant 0 : i32
    %c0_i32_1 = arith.constant 0 : i32
    return %c0_i32, %c0_i32_0 : i32, i32
  }
  func.func @transform_3(%arg0: i32) -> (i32, i32, i32) {
    %c0_i32 = arith.constant 0 : i32
    %c0_i32_0 = arith.constant 0 : i32
    %c0_i32_1 = arith.constant 0 : i32
    %c0_i32_2 = arith.constant 0 : i32
    return %c0_i32, %c0_i32_0, %c0_i32_1 : i32, i32, i32
  }
  func.func @transform_4(%arg0: i32) -> (i32, i32, i32) {
    %c0_i32 = arith.constant 0 : i32
    %c0_i32_0 = arith.constant 0 : i32
    %c0_i32_1 = arith.constant 0 : i32
    %c0_i32_2 = arith.constant 0 : i32
    return %c0_i32, %c0_i32_0, %c0_i32_1 : i32, i32, i32
  }
  func.func @transform_5(%arg0: i32) -> (i32, i32, i32) {
    %c0_i32 = arith.constant 0 : i32
    %c0_i32_0 = arith.constant 0 : i32
    %c0_i32_1 = arith.constant 0 : i32
    %c0_i32_2 = arith.constant 0 : i32
    return %c0_i32, %c0_i32_0, %c0_i32_1 : i32, i32, i32
  }
  func.func @transform_6(%arg0: i32) -> (i32, i32, i32) {
    %c0_i32 = arith.constant 0 : i32
    %c0_i32_0 = arith.constant 0 : i32
    %c0_i32_1 = arith.constant 0 : i32
    %c0_i32_2 = arith.constant 0 : i32
    return %c0_i32, %c0_i32_0, %c0_i32_1 : i32, i32, i32
  }
  func.func @transform_7(%arg0: i32) -> (i32, i32) {
    %c0_i32 = arith.constant 0 : i32
    %c0_i32_0 = arith.constant 0 : i32
    %c0_i32_1 = arith.constant 0 : i32
    return %c0_i32, %c0_i32_0 : i32, i32
  }
  func.func @transform_8(%arg0: i32) -> (i32, i32) {
    %c0_i32 = arith.constant 0 : i32
    %c0_i32_0 = arith.constant 0 : i32
    %c0_i32_1 = arith.constant 0 : i32
    return %c0_i32, %c0_i32_0 : i32, i32
  }
  func.func @transform_9(%arg0: i32) -> (i32, i32) {
    %c0_i32 = arith.constant 0 : i32
    %c0_i32_0 = arith.constant 0 : i32
    return %arg0, %c0_i32 : i32, i32
  }
}

</mosaic_0001>

<llo_original>
// kernel: myrnn_forward.1
$region0: #{myrnn_forward.1}
  #allocation0 [shape = 'u32[]', space=smem, size = 0x4, offset = 0x4, fixed_abs, tag = 'smem constant byte address 0x4 - core index']
  #allocation1 [shape = 'u32[144,128]{1,0:T(1,128)}', space=vmem, size = 0x12000, scoped, tag = 'internal scratch']
  #allocation2 [shape = 'f32[8,8,128]{2,1,0:T(8,128)}', space=vmem, size = 0x8000, scoped, tag = 'scratch operand']
  %s0 = inlined_call_operand.vmem [shape: f32[8,8,16], index: 0, kind: input, shape index: {}]
  %s1 = inlined_call_operand.vmem [shape: bf16[16,128], index: 1, kind: input, shape index: {}]
  %s2 = inlined_call_operand.vmem [shape: f32[1,128], index: 2, kind: input, shape index: {}]
  %s3 = inlined_call_operand.vmem [shape: bf16[2,128,128], index: 3, kind: input, shape index: {}]
  %s4 = inlined_call_operand.vmem [shape: bf16[2,128,128], index: 4, kind: input, shape index: {}]
  %s5 = inlined_call_operand.vmem [shape: f32[2,1,128], index: 5, kind: input, shape index: {}]
  %s6 = inlined_call_operand.vmem [shape: f32[2,1,128], index: 6, kind: input, shape index: {}]
  %s7 = inlined_call_operand.vmem [shape: bf16[128,128], index: 7, kind: input, shape index: {}]
  %s8 = inlined_call_operand.vmem [shape: f32[1,128], index: 8, kind: input, shape index: {}]
  %s9 = inlined_call_operand.vmem [shape: f32[8,128], index: 9, kind: output, shape index: {}]
  %s10 = sld [smem:[#allocation0]]
  $region46: #{myrnn_forward.1} parent=0
    _
  %s12 = ssub.s32 1, %s10
  %s13 = scalar_select 0, %s12, %s10
  // Predicated region
  $region2: #{myrnn_forward.1} parent=0 // pred_check
    _
  $region3: #{myrnn_forward.1} parent=0 // pred_check_branch
    %15 = sbr.rel (0) target = $region5
  $region4: #{myrnn_forward.1} parent=0 // pred_region
    _
  $region5: #{myrnn_forward.1} parent=0 // pred_fallthru
    _
  // Predicated region
  $region6: #{myrnn_forward.1} parent=0 // pred_check
    _
  $region7: #{myrnn_forward.1} parent=0 // pred_check_branch
    %17 = sbr.rel (0) target = $region9
  $region8: #{myrnn_forward.1} parent=0 // pred_region
    _
  $region9: #{myrnn_forward.1} parent=0 // pred_fallthru
    _
  // Predicated region
  $region10: #{myrnn_forward.1} parent=0 // pred_check
    _
  $region11: #{myrnn_forward.1} parent=0 // pred_check_branch
    %19 = sbr.rel (0) target = $region13
  $region12: #{myrnn_forward.1} parent=0 // pred_region
    _
  $region13: #{myrnn_forward.1} parent=0 // pred_fallthru
    _
  // Predicated region
  $region14: #{myrnn_forward.1} parent=0 // pred_check
    _
  $region15: #{myrnn_forward.1} parent=0 // pred_check_branch
    %21 = sbr.rel (0) target = $region17
  $region16: #{myrnn_forward.1} parent=0 // pred_region
    _
  $region17: #{myrnn_forward.1} parent=0 // pred_fallthru
    _
  // Predicated region
  $region18: #{myrnn_forward.1} parent=0 // pred_check
    _
  $region19: #{myrnn_forward.1} parent=0 // pred_check_branch
    %23 = sbr.rel (0) target = $region21
  $region20: #{myrnn_forward.1} parent=0 // pred_region
    _
  $region21: #{myrnn_forward.1} parent=0 // pred_fallthru
    _
  // Predicated region
  $region22: #{myrnn_forward.1} parent=0 // pred_check
    _
  $region23: #{myrnn_forward.1} parent=0 // pred_check_branch
    %25 = sbr.rel (0) target = $region25
  $region24: #{myrnn_forward.1} parent=0 // pred_region
    _
  $region25: #{myrnn_forward.1} parent=0 // pred_fallthru
    _
  // Predicated region
  $region26: #{myrnn_forward.1} parent=0 // pred_check
    _
  $region27: #{myrnn_forward.1} parent=0 // pred_check_branch
    %27 = sbr.rel (0) target = $region29
  $region28: #{myrnn_forward.1} parent=0 // pred_region
    _
  $region29: #{myrnn_forward.1} parent=0 // pred_fallthru
    _
  // Predicated region
  $region30: #{myrnn_forward.1} parent=0 // pred_check
    _
  $region31: #{myrnn_forward.1} parent=0 // pred_check_branch
    %29 = sbr.rel (0) target = $region33
  $region32: #{myrnn_forward.1} parent=0 // pred_region
    _
  $region33: #{myrnn_forward.1} parent=0 // pred_fallthru
    _
  // Predicated region
  $region34: #{myrnn_forward.1} parent=0 // pred_check
    _
  $region35: #{myrnn_forward.1} parent=0 // pred_check_branch
    %31 = sbr.rel (0) target = $region37
  $region36: #{myrnn_forward.1} parent=0 // pred_region
    _
  $region37: #{myrnn_forward.1} parent=0 // pred_fallthru
    _
  %v33 = vld [vmem:[%s0] sm:$0xff]
  %v34 = vld [vmem:[%s0 + $0x8] sm:$0xff]
  %v35 = vld [vmem:[%s0 + $0x10] sm:$0xff]
  %v36 = vld [vmem:[%s0 + $0x18] sm:$0xff]
  %v37 = vld [vmem:[%s0 + $0x20] sm:$0xff]
  %v38 = vld [vmem:[%s0 + $0x28] sm:$0xff]
  %v39 = vld [vmem:[%s0 + $0x30] sm:$0xff]
  %v40 = vld [vmem:[%s0 + $0x38] sm:$0xff]
  %v41 = vpack.c.bf16 %v34, %v33
  %v42 = vpack.c.bf16 %v36, %v35
  %v43 = vpack.c.bf16 %v38, %v37
  %v44 = vpack.c.bf16 %v40, %v39
  %v45 = vld [vmem:[%s1] sm:$0xf]
  %v46 = vld [vmem:[%s1 + $0x4] sm:$0xf]
  %v49 = vunpack.c.l.b16 %v45
  %v50 = vunpack.c.l.b16 %v46
  %v51 = vpack.c.b16 %v50, %v49
  %vm53 = vcmask 130048
  %v55 = vsel %vm53, %v41, 0
  %v58 = vsel %vm53, %v42, 0
  %v61 = vsel %vm53, %v43, 0
  %v64 = vsel %vm53, %v44, 0
  %66 = vmatprep.subr.bf16.mxu0 0
  %67 = vmatpush1.bf16.msra.mxu0 %v51
  %68 = vmatprep.subr.bf16.mxu0 0
  %69 = vmatpush1.bf16.msra.mxu0 0
  %70 = vmatprep.subr.bf16.mxu0 0
  %71 = vmatpush1.bf16.msra.mxu0 0
  %72 = vmatprep.subr.bf16.mxu0 0
  %73 = vmatpush1.bf16.msra.mxu0 0
  %74 = vmatprep.subr.bf16.mxu0 0
  %75 = vmatpush1.bf16.msra.mxu0 0
  %76 = vmatprep.subr.bf16.mxu0 0
  %77 = vmatpush1.bf16.msra.mxu0 0
  %78 = vmatprep.subr.bf16.mxu0 0
  %79 = vmatpush1.bf16.msra.mxu0 0
  %80 = vmatprep.subr.bf16.mxu0 0
  %81 = vmatpush1.bf16.msra.mxu0 0
  %82 = vmatprep.subr.bf16.mxu0 0
  %83 = vmatpush1.bf16.msra.mxu0 0
  %84 = vmatprep.subr.bf16.mxu0 0
  %85 = vmatpush1.bf16.msra.mxu0 0
  %86 = vmatprep.subr.bf16.mxu0 0
  %87 = vmatpush1.bf16.msra.mxu0 0
  %88 = vmatprep.subr.bf16.mxu0 0
  %89 = vmatpush1.bf16.msra.mxu0 0
  %90 = vmatprep.subr.bf16.mxu0 0
  %91 = vmatpush1.bf16.msra.mxu0 0
  %92 = vmatprep.subr.bf16.mxu0 0
  %93 = vmatpush1.bf16.msra.mxu0 0
  %94 = vmatprep.subr.bf16.mxu0 0
  %95 = vmatpush1.bf16.msra.mxu0 0
  %96 = vmatprep.subr.bf16.mxu0 0
  %97 = vmatpush1.bf16.msra.mxu0 0
  %98 = vmatprep.mubr.bf16.mxu0 0
  %99 = vmatmul.mubr.bf16.gmra.mrb[0].mxu0 %v55
  %v100 = vpop.f32.mrb[0].mxu0
  %v101 = vadd.f32 0.0, %v100
  %v102 = vpop.f32.mrb[0].mxu0
  %v103 = vpop.f32.mrb[0].mxu0
  %v104 = vadd.f32 0.0, %v103
  %v105 = vpop.f32.mrb[0].mxu0
  %106 = vmatprep.mubr.bf16.mxu0 0
  %107 = vmatmul.mubr.bf16.gmra.mrb[0].mxu0 %v58
  %v108 = vpop.f32.mrb[0].mxu0
  %v109 = vadd.f32 0.0, %v108
  %v110 = vpop.f32.mrb[0].mxu0
  %v111 = vpop.f32.mrb[0].mxu0
  %v112 = vadd.f32 0.0, %v111
  %v113 = vpop.f32.mrb[0].mxu0
  %114 = vmatprep.mubr.bf16.mxu0 0
  %115 = vmatmul.mubr.bf16.gmra.mrb[0].mxu0 %v61
  %v116 = vpop.f32.mrb[0].mxu0
  %v117 = vadd.f32 0.0, %v116
  %v118 = vpop.f32.mrb[0].mxu0
  %v119 = vpop.f32.mrb[0].mxu0
  %v120 = vadd.f32 0.0, %v119
  %v121 = vpop.f32.mrb[0].mxu0
  %122 = vmatprep.mubr.bf16.mxu0 0
  %123 = vmatmul.mubr.bf16.gmra.mrb[0].mxu0 %v64
  %v124 = vpop.f32.mrb[0].mxu0
  %v125 = vadd.f32 0.0, %v124
  %v126 = vpop.f32.mrb[0].mxu0
  %v127 = vpop.f32.mrb[0].mxu0
  %v128 = vadd.f32 0.0, %v127
  %v129 = vpop.f32.mrb[0].mxu0
  %130 = vdwg.mxu0
  %v131 = vld [vmem:[%s2] sm:$0x1]
  %v133 = vlaneseq
  %v134 = vshrl.u32 %v133, 7
  %v135 = vsub.s32 0, %v134
  %v136 = vrot.slane %v131, %v135
  %v138 = vadd.f32 %v101, %v136
  %v139 = vadd.f32 %v104, %v136
  %v140 = vadd.f32 %v109, %v136
  %v141 = vadd.f32 %v112, %v136
  %v142 = vadd.f32 %v117, %v136
  %v143 = vadd.f32 %v120, %v136
  %v144 = vadd.f32 %v125, %v136
  %v145 = vadd.f32 %v128, %v136
  %146 = vst [vmem:[#allocation2] sm:$0xff] %v138
  %147 = vst [vmem:[#allocation2 + $0x8] sm:$0xff] %v139
  %148 = vst [vmem:[#allocation2 + $0x10] sm:$0xff] %v140
  %149 = vst [vmem:[#allocation2 + $0x18] sm:$0xff] %v141
  %150 = vst [vmem:[#allocation2 + $0x20] sm:$0xff] %v142
  %151 = vst [vmem:[#allocation2 + $0x28] sm:$0xff] %v143
  %152 = vst [vmem:[#allocation2 + $0x30] sm:$0xff] %v144
  %153 = vst [vmem:[#allocation2 + $0x38] sm:$0xff] %v145
  %v154 = vld [vmem:[%s3] sm:$0xf]
  %v155 = vld [vmem:[%s3 + $0x4] sm:$0xf]
  %v156 = vld [vmem:[%s3 + $0x8] sm:$0xf]
  %v157 = vld [vmem:[%s3 + $0xc] sm:$0xf]
  %v158 = vld [vmem:[%s3 + $0x10] sm:$0xf]
  %v159 = vld [vmem:[%s3 + $0x14] sm:$0xf]
  %v160 = vld [vmem:[%s3 + $0x18] sm:$0xf]
  %v161 = vld [vmem:[%s3 + $0x1c] sm:$0xf]
  %v162 = vld [vmem:[%s3 + $0x20] sm:$0xf]
  %v163 = vld [vmem:[%s3 + $0x24] sm:$0xf]
  %v164 = vld [vmem:[%s3 + $0x28] sm:$0xf]
  %v165 = vld [vmem:[%s3 + $0x2c] sm:$0xf]
  %v166 = vld [vmem:[%s3 + $0x30] sm:$0xf]
  %v167 = vld [vmem:[%s3 + $0x34] sm:$0xf]
  %v168 = vld [vmem:[%s3 + $0x38] sm:$0xf]
  %v169 = vld [vmem:[%s3 + $0x3c] sm:$0xf]
  %v170 = vld [vmem:[%s4] sm:$0xf]
  %v171 = vld [vmem:[%s4 + $0x4] sm:$0xf]
  %v172 = vld [vmem:[%s4 + $0x8] sm:$0xf]
  %v173 = vld [vmem:[%s4 + $0xc] sm:$0xf]
  %v174 = vld [vmem:[%s4 + $0x10] sm:$0xf]
  %v175 = vld [vmem:[%s4 + $0x14] sm:$0xf]
  %v176 = vld [vmem:[%s4 + $0x18] sm:$0xf]
  %v177 = vld [vmem:[%s4 + $0x1c] sm:$0xf]
  %v178 = vld [vmem:[%s4 + $0x20] sm:$0xf]
  %v179 = vld [vmem:[%s4 + $0x24] sm:$0xf]
  %v180 = vld [vmem:[%s4 + $0x28] sm:$0xf]
  %v181 = vld [vmem:[%s4 + $0x2c] sm:$0xf]
  %v182 = vld [vmem:[%s4 + $0x30] sm:$0xf]
  %v183 = vld [vmem:[%s4 + $0x34] sm:$0xf]
  %v184 = vld [vmem:[%s4 + $0x38] sm:$0xf]
  %v185 = vld [vmem:[%s4 + $0x3c] sm:$0xf]
  %v186 = vld [vmem:[%s5] sm:$0x1]
  %v187 = vld [vmem:[%s6] sm:$0x1]
  %v188 = vadd.f32 %v186, %v187
  %v189 = vld [vmem:[#allocation2] sm:$0xff]
  %v190 = vld [vmem:[#allocation2 + $0x8] sm:$0xff]
  %v191 = vld [vmem:[#allocation2 + $0x10] sm:$0xff]
  %v192 = vld [vmem:[#allocation2 + $0x18] sm:$0xff]
  %v193 = vld [vmem:[#allocation2 + $0x20] sm:$0xff]
  %v194 = vld [vmem:[#allocation2 + $0x28] sm:$0xff]
  %v195 = vld [vmem:[#allocation2 + $0x30] sm:$0xff]
  %v196 = vld [vmem:[#allocation2 + $0x38] sm:$0xff]
  %v197 = vpack.c.bf16 %v190, %v189
  %v198 = vpack.c.bf16 %v192, %v191
  %v199 = vpack.c.bf16 %v194, %v193
  %v200 = vpack.c.bf16 %v196, %v195
  %v217 = vunpack.c.l.b16 %v154
  %v218 = vunpack.c.l.b16 %v155
  %v219 = vunpack.c.l.b16 %v156
  %v220 = vunpack.c.l.b16 %v157
  %v221 = vunpack.c.l.b16 %v158
  %v222 = vunpack.c.l.b16 %v159
  %v223 = vunpack.c.l.b16 %v160
  %v224 = vunpack.c.l.b16 %v161
  %v225 = vunpack.c.l.b16 %v162
  %v226 = vunpack.c.l.b16 %v163
  %v227 = vunpack.c.l.b16 %v164
  %v228 = vunpack.c.l.b16 %v165
  %v229 = vunpack.c.l.b16 %v166
  %v230 = vunpack.c.l.b16 %v167
  %v231 = vunpack.c.l.b16 %v168
  %v232 = vunpack.c.l.b16 %v169
  %v233 = vpack.c.b16 %v218, %v217
  %v234 = vpack.c.b16 %v220, %v219
  %v235 = vpack.c.b16 %v222, %v221
  %v236 = vpack.c.b16 %v224, %v223
  %v237 = vpack.c.b16 %v226, %v225
  %v238 = vpack.c.b16 %v228, %v227
  %v239 = vpack.c.b16 %v230, %v229
  %v240 = vpack.c.b16 %v232, %v231
  %249 = vmatprep.subr.bf16.mxu0 0
  %250 = vmatpush1.bf16.msra.mxu0 %v233
  %251 = vmatprep.subr.bf16.mxu0 0
  %252 = vmatpush1.bf16.msra.mxu0 %v234
  %253 = vmatprep.subr.bf16.mxu0 0
  %254 = vmatpush1.bf16.msra.mxu0 %v235
  %255 = vmatprep.subr.bf16.mxu0 0
  %256 = vmatpush1.bf16.msra.mxu0 %v236
  %257 = vmatprep.subr.bf16.mxu0 0
  %258 = vmatpush1.bf16.msra.mxu0 %v237
  %259 = vmatprep.subr.bf16.mxu0 0
  %260 = vmatpush1.bf16.msra.mxu0 %v238
  %261 = vmatprep.subr.bf16.mxu0 0
  %262 = vmatpush1.bf16.msra.mxu0 %v239
  %263 = vmatprep.subr.bf16.mxu0 0
  %264 = vmatpush1.bf16.msra.mxu0 %v240
  %265 = vmatprep.subr.bf16.mxu0 0
  %266 = vmatpush1.bf16.msra.mxu0 0
  %267 = vmatprep.subr.bf16.mxu0 0
  %268 = vmatpush1.bf16.msra.mxu0 0
  %269 = vmatprep.subr.bf16.mxu0 0
  %270 = vmatpush1.bf16.msra.mxu0 0
  %271 = vmatprep.subr.bf16.mxu0 0
  %272 = vmatpush1.bf16.msra.mxu0 0
  %273 = vmatprep.subr.bf16.mxu0 0
  %274 = vmatpush1.bf16.msra.mxu0 0
  %275 = vmatprep.subr.bf16.mxu0 0
  %276 = vmatpush1.bf16.msra.mxu0 0
  %277 = vmatprep.subr.bf16.mxu0 0
  %278 = vmatpush1.bf16.msra.mxu0 0
  %279 = vmatprep.subr.bf16.mxu0 0
  %280 = vmatpush1.bf16.msra.mxu0 0
  %281 = vmatprep.mubr.bf16.mxu0 0
  %282 = vmatmul.mubr.bf16.gmra.mrb[0].mxu0 %v197
  %v283 = vpop.f32.mrb[0].mxu0
  %v284 = vadd.f32 0.0, %v283
  %v285 = vpop.f32.mrb[0].mxu0
  %v286 = vpop.f32.mrb[0].mxu0
  %v287 = vadd.f32 0.0, %v286
  %v288 = vpop.f32.mrb[0].mxu0
  %289 = vmatprep.mubr.bf16.mxu0 0
  %290 = vmatmul.mubr.bf16.gmra.mrb[0].mxu0 %v198
  %v291 = vpop.f32.mrb[0].mxu0
  %v292 = vadd.f32 0.0, %v291
  %v293 = vpop.f32.mrb[0].mxu0
  %v294 = vpop.f32.mrb[0].mxu0
  %v295 = vadd.f32 0.0, %v294
  %v296 = vpop.f32.mrb[0].mxu0
  %297 = vmatprep.mubr.bf16.mxu0 0
  %298 = vmatmul.mubr.bf16.gmra.mrb[0].mxu0 %v199
  %v299 = vpop.f32.mrb[0].mxu0
  %v300 = vadd.f32 0.0, %v299
  %v301 = vpop.f32.mrb[0].mxu0
  %v302 = vpop.f32.mrb[0].mxu0
  %v303 = vadd.f32 0.0, %v302
  %v304 = vpop.f32.mrb[0].mxu0
  %305 = vmatprep.mubr.bf16.mxu0 0
  %306 = vmatmul.mubr.bf16.gmra.mrb[0].mxu0 %v200
  %v307 = vpop.f32.mrb[0].mxu0
  %v308 = vadd.f32 0.0, %v307
  %v309 = vpop.f32.mrb[0].mxu0
  %v310 = vpop.f32.mrb[0].mxu0
  %v311 = vadd.f32 0.0, %v310
  %v312 = vpop.f32.mrb[0].mxu0
  %313 = vdwg.mxu0
  %v315 = vlaneseq
  %v316 = vshrl.u32 %v315, 7
  %v317 = vsub.s32 0, %v316
  %v318 = vrot.slane %v188, %v317
  %v320 = vadd.f32 %v284, %v318
  %v321 = vadd.f32 %v287, %v318
  %v322 = vadd.f32 %v292, %v318
  %v323 = vadd.f32 %v295, %v318
  %v324 = vadd.f32 %v300, %v318
  %v325 = vadd.f32 %v303, %v318
  %v326 = vadd.f32 %v308, %v318
  %v327 = vadd.f32 %v311, %v318
  %328 = vst [vmem:[#allocation2] sm:$0xff] %v320
  %329 = vst [vmem:[#allocation2 + $0x8] sm:$0xff] %v321
  %330 = vst [vmem:[#allocation2 + $0x10] sm:$0xff] %v322
  %331 = vst [vmem:[#allocation2 + $0x18] sm:$0xff] %v323
  %332 = vst [vmem:[#allocation2 + $0x20] sm:$0xff] %v324
  %333 = vst [vmem:[#allocation2 + $0x28] sm:$0xff] %v325
  %334 = vst [vmem:[#allocation2 + $0x30] sm:$0xff] %v326
  %335 = vst [vmem:[#allocation2 + $0x38] sm:$0xff] %v327
  %v336 = vld [vmem:[#allocation2] sm:$0xff]
  %v353 = vunpack.c.l.b16 %v170
  %v354 = vunpack.c.l.b16 %v171
  %v355 = vunpack.c.l.b16 %v172
  %v356 = vunpack.c.l.b16 %v173
  %v357 = vunpack.c.l.b16 %v174
  %v358 = vunpack.c.l.b16 %v175
  %v359 = vunpack.c.l.b16 %v176
  %v360 = vunpack.c.l.b16 %v177
  %v361 = vunpack.c.l.b16 %v178
  %v362 = vunpack.c.l.b16 %v179
  %v363 = vunpack.c.l.b16 %v180
  %v364 = vunpack.c.l.b16 %v181
  %v365 = vunpack.c.l.b16 %v182
  %v366 = vunpack.c.l.b16 %v183
  %v367 = vunpack.c.l.b16 %v184
  %v368 = vunpack.c.l.b16 %v185
  %v369 = vpack.c.b16 %v354, %v353
  %v370 = vpack.c.b16 %v356, %v355
  %v371 = vpack.c.b16 %v358, %v357
  %v372 = vpack.c.b16 %v360, %v359
  %v373 = vpack.c.b16 %v362, %v361
  %v374 = vpack.c.b16 %v364, %v363
  %v375 = vpack.c.b16 %v366, %v365
  %v376 = vpack.c.b16 %v368, %v367
  %385 = vmatprep.subr.bf16.mxu0 0
  %386 = vmatpush1.bf16.msra.mxu0 %v369
  %387 = vmatprep.subr.bf16.mxu0 0
  %388 = vmatpush1.bf16.msra.mxu0 %v370
  %389 = vmatprep.subr.bf16.mxu0 0
  %390 = vmatpush1.bf16.msra.mxu0 %v371
  %391 = vmatprep.subr.bf16.mxu0 0
  %392 = vmatpush1.bf16.msra.mxu0 %v372
  %393 = vmatprep.subr.bf16.mxu0 0
  %394 = vmatpush1.bf16.msra.mxu0 %v373
  %395 = vmatprep.subr.bf16.mxu0 0
  %396 = vmatpush1.bf16.msra.mxu0 %v374
  %397 = vmatprep.subr.bf16.mxu0 0
  %398 = vmatpush1.bf16.msra.mxu0 %v375
  %399 = vmatprep.subr.bf16.mxu0 0
  %400 = vmatpush1.bf16.msra.mxu0 %v376
  %401 = vmatprep.subr.bf16.mxu0 0
  %402 = vmatpush1.bf16.msra.mxu0 0
  %403 = vmatprep.subr.bf16.mxu0 0
  %404 = vmatpush1.bf16.msra.mxu0 0
  %405 = vmatprep.subr.bf16.mxu0 0
  %406 = vmatpush1.bf16.msra.mxu0 0
  %407 = vmatprep.subr.bf16.mxu0 0
  %408 = vmatpush1.bf16.msra.mxu0 0
  %409 = vmatprep.subr.bf16.mxu0 0
  %410 = vmatpush1.bf16.msra.mxu0 0
  %411 = vmatprep.subr.bf16.mxu0 0
  %412 = vmatpush1.bf16.msra.mxu0 0
  %413 = vmatprep.subr.bf16.mxu0 0
  %414 = vmatpush1.bf16.msra.mxu0 0
  %415 = vmatprep.subr.bf16.mxu0 0
  %416 = vmatpush1.bf16.msra.mxu0 0
  %417 = vmatprep.mubr.bf16.mxu0 0
  %418 = vmatmul.mubr.bf16.gmra.mrb[0].mxu0 0
  %v419 = vpop.f32.mrb[0].mxu0
  %v420 = vadd.f32 0.0, %v419
  %v421 = vpop.f32.mrb[0].mxu0
  %v422 = vpop.f32.mrb[0].mxu0
  %v423 = vpop.f32.mrb[0].mxu0
  %424 = vdwg.mxu0
  %v425 = vadd.f32 %v336, %v420
  %v426 = vtanh.pop %v425
  %427 = vst [vmem:[#allocation2] sm:$0xff] %v426
  %s428 = scalar_lea.vmem [#allocation2], 8
  %v429 = vld [vmem:[%s428] sm:$0xff]
  %v430 = vpack.c.bf16 %v426, %v426
  %431 = vmatprep.subr.bf16.mxu0 0
  %432 = vmatpush1.bf16.msra.mxu0 %v369
  %433 = vmatprep.subr.bf16.mxu0 0
  %434 = vmatpush1.bf16.msra.mxu0 %v370
  %435 = vmatprep.subr.bf16.mxu0 0
  %436 = vmatpush1.bf16.msra.mxu0 %v371
  %437 = vmatprep.subr.bf16.mxu0 0
  %438 = vmatpush1.bf16.msra.mxu0 %v372
  %439 = vmatprep.subr.bf16.mxu0 0
  %440 = vmatpush1.bf16.msra.mxu0 %v373
  %441 = vmatprep.subr.bf16.mxu0 0
  %442 = vmatpush1.bf16.msra.mxu0 %v374
  %443 = vmatprep.subr.bf16.mxu0 0
  %444 = vmatpush1.bf16.msra.mxu0 %v375
  %445 = vmatprep.subr.bf16.mxu0 0
  %446 = vmatpush1.bf16.msra.mxu0 %v376
  %447 = vmatprep.subr.bf16.mxu0 0
  %448 = vmatpush1.bf16.msra.mxu0 0
  %449 = vmatprep.subr.bf16.mxu0 0
  %450 = vmatpush1.bf16.msra.mxu0 0
  %451 = vmatprep.subr.bf16.mxu0 0
  %452 = vmatpush1.bf16.msra.mxu0 0
  %453 = vmatprep.subr.bf16.mxu0 0
  %454 = vmatpush1.bf16.msra.mxu0 0
  %455 = vmatprep.subr.bf16.mxu0 0
  %456 = vmatpush1.bf16.msra.mxu0 0
  %457 = vmatprep.subr.bf16.mxu0 0
  %458 = vmatpush1.bf16.msra.mxu0 0
  %459 = vmatprep.subr.bf16.mxu0 0
  %460 = vmatpush1.bf16.msra.mxu0 0
  %461 = vmatprep.subr.bf16.mxu0 0
  %462 = vmatpush1.bf16.msra.mxu0 0
  %463 = vmatprep.mubr.bf16.mxu0 0
  %464 = vmatmul.mubr.bf16.gmra.mrb[0].mxu0 %v430
  %v465 = vpop.f32.mrb[0].mxu0
  %v466 = vadd.f32 0.0, %v465
  %v467 = vpop.f32.mrb[0].mxu0
  %v468 = vpop.f32.mrb[0].mxu0
  %v469 = vpop.f32.mrb[0].mxu0
  %470 = vdwg.mxu0
  %v471 = vadd.f32 %v429, %v466
  %v472 = vtanh.pop %v471
  %473 = vst [vmem:[%s428] sm:$0xff] %v472
  %s474 = scalar_lea.vmem [#allocation2], 16
  %v475 = vld [vmem:[%s474] sm:$0xff]
  %v476 = vpack.c.bf16 %v472, %v472
  %477 = vmatprep.subr.bf16.mxu0 0
  %478 = vmatpush1.bf16.msra.mxu0 %v369
  %479 = vmatprep.subr.bf16.mxu0 0
  %480 = vmatpush1.bf16.msra.mxu0 %v370
  %481 = vmatprep.subr.bf16.mxu0 0
  %482 = vmatpush1.bf16.msra.mxu0 %v371
  %483 = vmatprep.subr.bf16.mxu0 0
  %484 = vmatpush1.bf16.msra.mxu0 %v372
  %485 = vmatprep.subr.bf16.mxu0 0
  %486 = vmatpush1.bf16.msra.mxu0 %v373
  %487 = vmatprep.subr.bf16.mxu0 0
  %488 = vmatpush1.bf16.msra.mxu0 %v374
  %489 = vmatprep.subr.bf16.mxu0 0
  %490 = vmatpush1.bf16.msra.mxu0 %v375
  %491 = vmatprep.subr.bf16.mxu0 0
  %492 = vmatpush1.bf16.msra.mxu0 %v376
  %493 = vmatprep.subr.bf16.mxu0 0
  %494 = vmatpush1.bf16.msra.mxu0 0
  %495 = vmatprep.subr.bf16.mxu0 0
  %496 = vmatpush1.bf16.msra.mxu0 0
  %497 = vmatprep.subr.bf16.mxu0 0
  %498 = vmatpush1.bf16.msra.mxu0 0
  %499 = vmatprep.subr.bf16.mxu0 0
  %500 = vmatpush1.bf16.msra.mxu0 0
  %501 = vmatprep.subr.bf16.mxu0 0
  %502 = vmatpush1.bf16.msra.mxu0 0
  %503 = vmatprep.subr.bf16.mxu0 0
  %504 = vmatpush1.bf16.msra.mxu0 0
  %505 = vmatprep.subr.bf16.mxu0 0
  %506 = vmatpush1.bf16.msra.mxu0 0
  %507 = vmatprep.subr.bf16.mxu0 0
  %508 = vmatpush1.bf16.msra.mxu0 0
  %509 = vmatprep.mubr.bf16.mxu0 0
  %510 = vmatmul.mubr.bf16.gmra.mrb[0].mxu0 %v476
  %v511 = vpop.f32.mrb[0].mxu0
  %v512 = vadd.f32 0.0, %v511
  %v513 = vpop.f32.mrb[0].mxu0
  %v514 = vpop.f32.mrb[0].mxu0
  %v515 = vpop.f32.mrb[0].mxu0
  %516 = vdwg.mxu0
  %v517 = vadd.f32 %v475, %v512
  %v518 = vtanh.pop %v517
  %519 = vst [vmem:[%s474] sm:$0xff] %v518
  %s520 = scalar_lea.vmem [#allocation2], 24
  %v521 = vld [vmem:[%s520] sm:$0xff]
  %v522 = vpack.c.bf16 %v518, %v518
  %523 = vmatprep.subr.bf16.mxu0 0
  %524 = vmatpush1.bf16.msra.mxu0 %v369
  %525 = vmatprep.subr.bf16.mxu0 0
  %526 = vmatpush1.bf16.msra.mxu0 %v370
  %527 = vmatprep.subr.bf16.mxu0 0
  %528 = vmatpush1.bf16.msra.mxu0 %v371
  %529 = vmatprep.subr.bf16.mxu0 0
  %530 = vmatpush1.bf16.msra.mxu0 %v372
  %531 = vmatprep.subr.bf16.mxu0 0
  %532 = vmatpush1.bf16.msra.mxu0 %v373
  %533 = vmatprep.subr.bf16.mxu0 0
  %534 = vmatpush1.bf16.msra.mxu0 %v374
  %535 = vmatprep.subr.bf16.mxu0 0
  %536 = vmatpush1.bf16.msra.mxu0 %v375
  %537 = vmatprep.subr.bf16.mxu0 0
  %538 = vmatpush1.bf16.msra.mxu0 %v376
  %539 = vmatprep.subr.bf16.mxu0 0
  %540 = vmatpush1.bf16.msra.mxu0 0
  %541 = vmatprep.subr.bf16.mxu0 0
  %542 = vmatpush1.bf16.msra.mxu0 0
  %543 = vmatprep.subr.bf16.mxu0 0
  %544 = vmatpush1.bf16.msra.mxu0 0
  %545 = vmatprep.subr.bf16.mxu0 0
  %546 = vmatpush1.bf16.msra.mxu0 0
  %547 = vmatprep.subr.bf16.mxu0 0
  %548 = vmatpush1.bf16.msra.mxu0 0
  %549 = vmatprep.subr.bf16.mxu0 0
  %550 = vmatpush1.bf16.msra.mxu0 0
  %551 = vmatprep.subr.bf16.mxu0 0
  %552 = vmatpush1.bf16.msra.mxu0 0
  %553 = vmatprep.subr.bf16.mxu0 0
  %554 = vmatpush1.bf16.msra.mxu0 0
  %555 = vmatprep.mubr.bf16.mxu0 0
  %556 = vmatmul.mubr.bf16.gmra.mrb[0].mxu0 %v522
  %v557 = vpop.f32.mrb[0].mxu0
  %v558 = vadd.f32 0.0, %v557
  %v559 = vpop.f32.mrb[0].mxu0
  %v560 = vpop.f32.mrb[0].mxu0
  %v561 = vpop.f32.mrb[0].mxu0
  %562 = vdwg.mxu0
  %v563 = vadd.f32 %v521, %v558
  %v564 = vtanh.pop %v563
  %565 = vst [vmem:[%s520] sm:$0xff] %v564
  %s566 = scalar_lea.vmem [#allocation2], 32
  %v567 = vld [vmem:[%s566] sm:$0xff]
  %v568 = vpack.c.bf16 %v564, %v564
  %569 = vmatprep.subr.bf16.mxu0 0
  %570 = vmatpush1.bf16.msra.mxu0 %v369
  %571 = vmatprep.subr.bf16.mxu0 0
  %572 = vmatpush1.bf16.msra.mxu0 %v370
  %573 = vmatprep.subr.bf16.mxu0 0
  %574 = vmatpush1.bf16.msra.mxu0 %v371
  %575 = vmatprep.subr.bf16.mxu0 0
  %576 = vmatpush1.bf16.msra.mxu0 %v372
  %577 = vmatprep.subr.bf16.mxu0 0
  %578 = vmatpush1.bf16.msra.mxu0 %v373
  %579 = vmatprep.subr.bf16.mxu0 0
  %580 = vmatpush1.bf16.msra.mxu0 %v374
  %581 = vmatprep.subr.bf16.mxu0 0
  %582 = vmatpush1.bf16.msra.mxu0 %v375
  %583 = vmatprep.subr.bf16.mxu0 0
  %584 = vmatpush1.bf16.msra.mxu0 %v376
  %585 = vmatprep.subr.bf16.mxu0 0
  %586 = vmatpush1.bf16.msra.mxu0 0
  %587 = vmatprep.subr.bf16.mxu0 0
  %588 = vmatpush1.bf16.msra.mxu0 0
  %589 = vmatprep.subr.bf16.mxu0 0
  %590 = vmatpush1.bf16.msra.mxu0 0
  %591 = vmatprep.subr.bf16.mxu0 0
  %592 = vmatpush1.bf16.msra.mxu0 0
  %593 = vmatprep.subr.bf16.mxu0 0
  %594 = vmatpush1.bf16.msra.mxu0 0
  %595 = vmatprep.subr.bf16.mxu0 0
  %596 = vmatpush1.bf16.msra.mxu0 0
  %597 = vmatprep.subr.bf16.mxu0 0
  %598 = vmatpush1.bf16.msra.mxu0 0
  %599 = vmatprep.subr.bf16.mxu0 0
  %600 = vmatpush1.bf16.msra.mxu0 0
  %601 = vmatprep.mubr.bf16.mxu0 0
  %602 = vmatmul.mubr.bf16.gmra.mrb[0].mxu0 %v568
  %v603 = vpop.f32.mrb[0].mxu0
  %v604 = vadd.f32 0.0, %v603
  %v605 = vpop.f32.mrb[0].mxu0
  %v606 = vpop.f32.mrb[0].mxu0
  %v607 = vpop.f32.mrb[0].mxu0
  %608 = vdwg.mxu0
  %v609 = vadd.f32 %v567, %v604
  %v610 = vtanh.pop %v609
  %611 = vst [vmem:[%s566] sm:$0xff] %v610
  %s612 = scalar_lea.vmem [#allocation2], 40
  %v613 = vld [vmem:[%s612] sm:$0xff]
  %v614 = vpack.c.bf16 %v610, %v610
  %615 = vmatprep.subr.bf16.mxu0 0
  %616 = vmatpush1.bf16.msra.mxu0 %v369
  %617 = vmatprep.subr.bf16.mxu0 0
  %618 = vmatpush1.bf16.msra.mxu0 %v370
  %619 = vmatprep.subr.bf16.mxu0 0
  %620 = vmatpush1.bf16.msra.mxu0 %v371
  %621 = vmatprep.subr.bf16.mxu0 0
  %622 = vmatpush1.bf16.msra.mxu0 %v372
  %623 = vmatprep.subr.bf16.mxu0 0
  %624 = vmatpush1.bf16.msra.mxu0 %v373
  %625 = vmatprep.subr.bf16.mxu0 0
  %626 = vmatpush1.bf16.msra.mxu0 %v374
  %627 = vmatprep.subr.bf16.mxu0 0
  %628 = vmatpush1.bf16.msra.mxu0 %v375
  %629 = vmatprep.subr.bf16.mxu0 0
  %630 = vmatpush1.bf16.msra.mxu0 %v376
  %631 = vmatprep.subr.bf16.mxu0 0
  %632 = vmatpush1.bf16.msra.mxu0 0
  %633 = vmatprep.subr.bf16.mxu0 0
  %634 = vmatpush1.bf16.msra.mxu0 0
  %635 = vmatprep.subr.bf16.mxu0 0
  %636 = vmatpush1.bf16.msra.mxu0 0
  %637 = vmatprep.subr.bf16.mxu0 0
  %638 = vmatpush1.bf16.msra.mxu0 0
  %639 = vmatprep.subr.bf16.mxu0 0
  %640 = vmatpush1.bf16.msra.mxu0 0
  %641 = vmatprep.subr.bf16.mxu0 0
  %642 = vmatpush1.bf16.msra.mxu0 0
  %643 = vmatprep.subr.bf16.mxu0 0
  %644 = vmatpush1.bf16.msra.mxu0 0
  %645 = vmatprep.subr.bf16.mxu0 0
  %646 = vmatpush1.bf16.msra.mxu0 0
  %647 = vmatprep.mubr.bf16.mxu0 0
  %648 = vmatmul.mubr.bf16.gmra.mrb[0].mxu0 %v614
  %v649 = vpop.f32.mrb[0].mxu0
  %v650 = vadd.f32 0.0, %v649
  %v651 = vpop.f32.mrb[0].mxu0
  %v652 = vpop.f32.mrb[0].mxu0
  %v653 = vpop.f32.mrb[0].mxu0
  %654 = vdwg.mxu0
  %v655 = vadd.f32 %v613, %v650
  %v656 = vtanh.pop %v655
  %657 = vst [vmem:[%s612] sm:$0xff] %v656
  %s658 = scalar_lea.vmem [#allocation2], 48
  %v659 = vld [vmem:[%s658] sm:$0xff]
  %v660 = vpack.c.bf16 %v656, %v656
  %661 = vmatprep.subr.bf16.mxu0 0
  %662 = vmatpush1.bf16.msra.mxu0 %v369
  %663 = vmatprep.subr.bf16.mxu0 0
  %664 = vmatpush1.bf16.msra.mxu0 %v370
  %665 = vmatprep.subr.bf16.mxu0 0
  %666 = vmatpush1.bf16.msra.mxu0 %v371
  %667 = vmatprep.subr.bf16.mxu0 0
  %668 = vmatpush1.bf16.msra.mxu0 %v372
  %669 = vmatprep.subr.bf16.mxu0 0
  %670 = vmatpush1.bf16.msra.mxu0 %v373
  %671 = vmatprep.subr.bf16.mxu0 0
  %672 = vmatpush1.bf16.msra.mxu0 %v374
  %673 = vmatprep.subr.bf16.mxu0 0
  %674 = vmatpush1.bf16.msra.mxu0 %v375
  %675 = vmatprep.subr.bf16.mxu0 0
  %676 = vmatpush1.bf16.msra.mxu0 %v376
  %677 = vmatprep.subr.bf16.mxu0 0
  %678 = vmatpush1.bf16.msra.mxu0 0
  %679 = vmatprep.subr.bf16.mxu0 0
  %680 = vmatpush1.bf16.msra.mxu0 0
  %681 = vmatprep.subr.bf16.mxu0 0
  %682 = vmatpush1.bf16.msra.mxu0 0
  %683 = vmatprep.subr.bf16.mxu0 0
  %684 = vmatpush1.bf16.msra.mxu0 0
  %685 = vmatprep.subr.bf16.mxu0 0
  %686 = vmatpush1.bf16.msra.mxu0 0
  %687 = vmatprep.subr.bf16.mxu0 0
  %688 = vmatpush1.bf16.msra.mxu0 0
  %689 = vmatprep.subr.bf16.mxu0 0
  %690 = vmatpush1.bf16.msra.mxu0 0
  %691 = vmatprep.subr.bf16.mxu0 0
  %692 = vmatpush1.bf16.msra.mxu0 0
  %693 = vmatprep.mubr.bf16.mxu0 0
  %694 = vmatmul.mubr.bf16.gmra.mrb[0].mxu0 %v660
  %v695 = vpop.f32.mrb[0].mxu0
  %v696 = vadd.f32 0.0, %v695
  %v697 = vpop.f32.mrb[0].mxu0
  %v698 = vpop.f32.mrb[0].mxu0
  %v699 = vpop.f32.mrb[0].mxu0
  %700 = vdwg.mxu0
  %v701 = vadd.f32 %v659, %v696
  %v702 = vtanh.pop %v701
  %703 = vst [vmem:[%s658] sm:$0xff] %v702
  %s704 = scalar_lea.vmem [#allocation2], 56
  %v705 = vld [vmem:[%s704] sm:$0xff]
  %v706 = vpack.c.bf16 %v702, %v702
  %707 = vmatprep.subr.bf16.mxu0 0
  %708 = vmatpush1.bf16.msra.mxu0 %v369
  %709 = vmatprep.subr.bf16.mxu0 0
  %710 = vmatpush1.bf16.msra.mxu0 %v370
  %711 = vmatprep.subr.bf16.mxu0 0
  %712 = vmatpush1.bf16.msra.mxu0 %v371
  %713 = vmatprep.subr.bf16.mxu0 0
  %714 = vmatpush1.bf16.msra.mxu0 %v372
  %715 = vmatprep.subr.bf16.mxu0 0
  %716 = vmatpush1.bf16.msra.mxu0 %v373
  %717 = vmatprep.subr.bf16.mxu0 0
  %718 = vmatpush1.bf16.msra.mxu0 %v374
  %719 = vmatprep.subr.bf16.mxu0 0
  %720 = vmatpush1.bf16.msra.mxu0 %v375
  %721 = vmatprep.subr.bf16.mxu0 0
  %722 = vmatpush1.bf16.msra.mxu0 %v376
  %723 = vmatprep.subr.bf16.mxu0 0
  %724 = vmatpush1.bf16.msra.mxu0 0
  %725 = vmatprep.subr.bf16.mxu0 0
  %726 = vmatpush1.bf16.msra.mxu0 0
  %727 = vmatprep.subr.bf16.mxu0 0
  %728 = vmatpush1.bf16.msra.mxu0 0
  %729 = vmatprep.subr.bf16.mxu0 0
  %730 = vmatpush1.bf16.msra.mxu0 0
  %731 = vmatprep.subr.bf16.mxu0 0
  %732 = vmatpush1.bf16.msra.mxu0 0
  %733 = vmatprep.subr.bf16.mxu0 0
  %734 = vmatpush1.bf16.msra.mxu0 0
  %735 = vmatprep.subr.bf16.mxu0 0
  %736 = vmatpush1.bf16.msra.mxu0 0
  %737 = vmatprep.subr.bf16.mxu0 0
  %738 = vmatpush1.bf16.msra.mxu0 0
  %739 = vmatprep.mubr.bf16.mxu0 0
  %740 = vmatmul.mubr.bf16.gmra.mrb[0].mxu0 %v706
  %v741 = vpop.f32.mrb[0].mxu0
  %v742 = vadd.f32 0.0, %v741
  %v743 = vpop.f32.mrb[0].mxu0
  %v744 = vpop.f32.mrb[0].mxu0
  %v745 = vpop.f32.mrb[0].mxu0
  %746 = vdwg.mxu0
  %v747 = vadd.f32 %v705, %v742
  %v748 = vtanh.pop %v747
  %749 = vst [vmem:[%s704] sm:$0xff] %v748
  %s750 = scalar_lea.vmem %s3, 64
  %v751 = vld [vmem:[%s750] sm:$0xf]
  %v752 = vld [vmem:[%s750 + $0x4] sm:$0xf]
  %v753 = vld [vmem:[%s750 + $0x8] sm:$0xf]
  %v754 = vld [vmem:[%s750 + $0xc] sm:$0xf]
  %v755 = vld [vmem:[%s750 + $0x10] sm:$0xf]
  %v756 = vld [vmem:[%s750 + $0x14] sm:$0xf]
  %v757 = vld [vmem:[%s750 + $0x18] sm:$0xf]
  %v758 = vld [vmem:[%s750 + $0x1c] sm:$0xf]
  %v759 = vld [vmem:[%s750 + $0x20] sm:$0xf]
  %v760 = vld [vmem:[%s750 + $0x24] sm:$0xf]
  %v761 = vld [vmem:[%s750 + $0x28] sm:$0xf]
  %v762 = vld [vmem:[%s750 + $0x2c] sm:$0xf]
  %v763 = vld [vmem:[%s750 + $0x30] sm:$0xf]
  %v764 = vld [vmem:[%s750 + $0x34] sm:$0xf]
  %v765 = vld [vmem:[%s750 + $0x38] sm:$0xf]
  %v766 = vld [vmem:[%s750 + $0x3c] sm:$0xf]
  %s767 = scalar_lea.vmem %s4, 64
  %v768 = vld [vmem:[%s767] sm:$0xf]
  %v769 = vld [vmem:[%s767 + $0x4] sm:$0xf]
  %v770 = vld [vmem:[%s767 + $0x8] sm:$0xf]
  %v771 = vld [vmem:[%s767 + $0xc] sm:$0xf]
  %v772 = vld [vmem:[%s767 + $0x10] sm:$0xf]
  %v773 = vld [vmem:[%s767 + $0x14] sm:$0xf]
  %v774 = vld [vmem:[%s767 + $0x18] sm:$0xf]
  %v775 = vld [vmem:[%s767 + $0x1c] sm:$0xf]
  %v776 = vld [vmem:[%s767 + $0x20] sm:$0xf]
  %v777 = vld [vmem:[%s767 + $0x24] sm:$0xf]
  %v778 = vld [vmem:[%s767 + $0x28] sm:$0xf]
  %v779 = vld [vmem:[%s767 + $0x2c] sm:$0xf]
  %v780 = vld [vmem:[%s767 + $0x30] sm:$0xf]
  %v781 = vld [vmem:[%s767 + $0x34] sm:$0xf]
  %v782 = vld [vmem:[%s767 + $0x38] sm:$0xf]
  %v783 = vld [vmem:[%s767 + $0x3c] sm:$0xf]
  %s784 = scalar_lea.vmem %s5, 1
  %v785 = vld [vmem:[%s784] sm:$0x1]
  %s786 = scalar_lea.vmem %s6, 1
  %v787 = vld [vmem:[%s786] sm:$0x1]
  %v788 = vadd.f32 %v785, %v787
  %v789 = vld [vmem:[#allocation2] sm:$0xff]
  %v790 = vld [vmem:[#allocation2 + $0x8] sm:$0xff]
  %v791 = vld [vmem:[#allocation2 + $0x10] sm:$0xff]
  %v792 = vld [vmem:[#allocation2 + $0x18] sm:$0xff]
  %v793 = vld [vmem:[#allocation2 + $0x20] sm:$0xff]
  %v794 = vld [vmem:[#allocation2 + $0x28] sm:$0xff]
  %v795 = vld [vmem:[#allocation2 + $0x30] sm:$0xff]
  %v796 = vld [vmem:[#allocation2 + $0x38] sm:$0xff]
  %v797 = vpack.c.bf16 %v790, %v789
  %v798 = vpack.c.bf16 %v792, %v791
  %v799 = vpack.c.bf16 %v794, %v793
  %v800 = vpack.c.bf16 %v796, %v795
  %v817 = vunpack.c.l.b16 %v751
  %v818 = vunpack.c.l.b16 %v752
  %v819 = vunpack.c.l.b16 %v753
  %v820 = vunpack.c.l.b16 %v754
  %v821 = vunpack.c.l.b16 %v755
  %v822 = vunpack.c.l.b16 %v756
  %v823 = vunpack.c.l.b16 %v757
  %v824 = vunpack.c.l.b16 %v758
  %v825 = vunpack.c.l.b16 %v759
  %v826 = vunpack.c.l.b16 %v760
  %v827 = vunpack.c.l.b16 %v761
  %v828 = vunpack.c.l.b16 %v762
  %v829 = vunpack.c.l.b16 %v763
  %v830 = vunpack.c.l.b16 %v764
  %v831 = vunpack.c.l.b16 %v765
  %v832 = vunpack.c.l.b16 %v766
  %v833 = vpack.c.b16 %v818, %v817
  %v834 = vpack.c.b16 %v820, %v819
  %v835 = vpack.c.b16 %v822, %v821
  %v836 = vpack.c.b16 %v824, %v823
  %v837 = vpack.c.b16 %v826, %v825
  %v838 = vpack.c.b16 %v828, %v827
  %v839 = vpack.c.b16 %v830, %v829
  %v840 = vpack.c.b16 %v832, %v831
  %849 = vmatprep.subr.bf16.mxu0 0
  %850 = vmatpush1.bf16.msra.mxu0 %v833
  %851 = vmatprep.subr.bf16.mxu0 0
  %852 = vmatpush1.bf16.msra.mxu0 %v834
  %853 = vmatprep.subr.bf16.mxu0 0
  %854 = vmatpush1.bf16.msra.mxu0 %v835
  %855 = vmatprep.subr.bf16.mxu0 0
  %856 = vmatpush1.bf16.msra.mxu0 %v836
  %857 = vmatprep.subr.bf16.mxu0 0
  %858 = vmatpush1.bf16.msra.mxu0 %v837
  %859 = vmatprep.subr.bf16.mxu0 0
  %860 = vmatpush1.bf16.msra.mxu0 %v838
  %861 = vmatprep.subr.bf16.mxu0 0
  %862 = vmatpush1.bf16.msra.mxu0 %v839
  %863 = vmatprep.subr.bf16.mxu0 0
  %864 = vmatpush1.bf16.msra.mxu0 %v840
  %865 = vmatprep.subr.bf16.mxu0 0
  %866 = vmatpush1.bf16.msra.mxu0 0
  %867 = vmatprep.subr.bf16.mxu0 0
  %868 = vmatpush1.bf16.msra.mxu0 0
  %869 = vmatprep.subr.bf16.mxu0 0
  %870 = vmatpush1.bf16.msra.mxu0 0
  %871 = vmatprep.subr.bf16.mxu0 0
  %872 = vmatpush1.bf16.msra.mxu0 0
  %873 = vmatprep.subr.bf16.mxu0 0
  %874 = vmatpush1.bf16.msra.mxu0 0
  %875 = vmatprep.subr.bf16.mxu0 0
  %876 = vmatpush1.bf16.msra.mxu0 0
  %877 = vmatprep.subr.bf16.mxu0 0
  %878 = vmatpush1.bf16.msra.mxu0 0
  %879 = vmatprep.subr.bf16.mxu0 0
  %880 = vmatpush1.bf16.msra.mxu0 0
  %881 = vmatprep.mubr.bf16.mxu0 0
  %882 = vmatmul.mubr.bf16.gmra.mrb[0].mxu0 %v797
  %v883 = vpop.f32.mrb[0].mxu0
  %v884 = vadd.f32 0.0, %v883
  %v885 = vpop.f32.mrb[0].mxu0
  %v886 = vpop.f32.mrb[0].mxu0
  %v887 = vadd.f32 0.0, %v886
  %v888 = vpop.f32.mrb[0].mxu0
  %889 = vmatprep.mubr.bf16.mxu0 0
  %890 = vmatmul.mubr.bf16.gmra.mrb[0].mxu0 %v798
  %v891 = vpop.f32.mrb[0].mxu0
  %v892 = vadd.f32 0.0, %v891
  %v893 = vpop.f32.mrb[0].mxu0
  %v894 = vpop.f32.mrb[0].mxu0
  %v895 = vadd.f32 0.0, %v894
  %v896 = vpop.f32.mrb[0].mxu0
  %897 = vmatprep.mubr.bf16.mxu0 0
  %898 = vmatmul.mubr.bf16.gmra.mrb[0].mxu0 %v799
  %v899 = vpop.f32.mrb[0].mxu0
  %v900 = vadd.f32 0.0, %v899
  %v901 = vpop.f32.mrb[0].mxu0
  %v902 = vpop.f32.mrb[0].mxu0
  %v903 = vadd.f32 0.0, %v902
  %v904 = vpop.f32.mrb[0].mxu0
  %905 = vmatprep.mubr.bf16.mxu0 0
  %906 = vmatmul.mubr.bf16.gmra.mrb[0].mxu0 %v800
  %v907 = vpop.f32.mrb[0].mxu0
  %v908 = vadd.f32 0.0, %v907
  %v909 = vpop.f32.mrb[0].mxu0
  %v910 = vpop.f32.mrb[0].mxu0
  %v911 = vadd.f32 0.0, %v910
  %v912 = vpop.f32.mrb[0].mxu0
  %913 = vdwg.mxu0
  %v915 = vlaneseq
  %v916 = vshrl.u32 %v915, 7
  %v917 = vsub.s32 0, %v916
  %v918 = vrot.slane %v788, %v917
  %v920 = vadd.f32 %v884, %v918
  %v921 = vadd.f32 %v887, %v918
  %v922 = vadd.f32 %v892, %v918
  %v923 = vadd.f32 %v895, %v918
  %v924 = vadd.f32 %v900, %v918
  %v925 = vadd.f32 %v903, %v918
  %v926 = vadd.f32 %v908, %v918
  %v927 = vadd.f32 %v911, %v918
  %928 = vst [vmem:[#allocation2] sm:$0xff] %v920
  %929 = vst [vmem:[#allocation2 + $0x8] sm:$0xff] %v921
  %930 = vst [vmem:[#allocation2 + $0x10] sm:$0xff] %v922
  %931 = vst [vmem:[#allocation2 + $0x18] sm:$0xff] %v923
  %932 = vst [vmem:[#allocation2 + $0x20] sm:$0xff] %v924
  %933 = vst [vmem:[#allocation2 + $0x28] sm:$0xff] %v925
  %934 = vst [vmem:[#allocation2 + $0x30] sm:$0xff] %v926
  %935 = vst [vmem:[#allocation2 + $0x38] sm:$0xff] %v927
  %v936 = vld [vmem:[#allocation2] sm:$0xff]
  %v953 = vunpack.c.l.b16 %v768
  %v954 = vunpack.c.l.b16 %v769
  %v955 = vunpack.c.l.b16 %v770
  %v956 = vunpack.c.l.b16 %v771
  %v957 = vunpack.c.l.b16 %v772
  %v958 = vunpack.c.l.b16 %v773
  %v959 = vunpack.c.l.b16 %v774
  %v960 = vunpack.c.l.b16 %v775
  %v961 = vunpack.c.l.b16 %v776
  %v962 = vunpack.c.l.b16 %v777
  %v963 = vunpack.c.l.b16 %v778
  %v964 = vunpack.c.l.b16 %v779
  %v965 = vunpack.c.l.b16 %v780
  %v966 = vunpack.c.l.b16 %v781
  %v967 = vunpack.c.l.b16 %v782
  %v968 = vunpack.c.l.b16 %v783
  %v969 = vpack.c.b16 %v954, %v953
  %v970 = vpack.c.b16 %v956, %v955
  %v971 = vpack.c.b16 %v958, %v957
  %v972 = vpack.c.b16 %v960, %v959
  %v973 = vpack.c.b16 %v962, %v961
  %v974 = vpack.c.b16 %v964, %v963
  %v975 = vpack.c.b16 %v966, %v965
  %v976 = vpack.c.b16 %v968, %v967
  %985 = vmatprep.subr.bf16.mxu0 0
  %986 = vmatpush1.bf16.msra.mxu0 %v969
  %987 = vmatprep.subr.bf16.mxu0 0
  %988 = vmatpush1.bf16.msra.mxu0 %v970
  %989 = vmatprep.subr.bf16.mxu0 0
  %990 = vmatpush1.bf16.msra.mxu0 %v971
  %991 = vmatprep.subr.bf16.mxu0 0
  %992 = vmatpush1.bf16.msra.mxu0 %v972
  %993 = vmatprep.subr.bf16.mxu0 0
  %994 = vmatpush1.bf16.msra.mxu0 %v973
  %995 = vmatprep.subr.bf16.mxu0 0
  %996 = vmatpush1.bf16.msra.mxu0 %v974
  %997 = vmatprep.subr.bf16.mxu0 0
  %998 = vmatpush1.bf16.msra.mxu0 %v975
  %999 = vmatprep.subr.bf16.mxu0 0
  %1000 = vmatpush1.bf16.msra.mxu0 %v976
  %1001 = vmatprep.subr.bf16.mxu0 0
  %1002 = vmatpush1.bf16.msra.mxu0 0
  %1003 = vmatprep.subr.bf16.mxu0 0
  %1004 = vmatpush1.bf16.msra.mxu0 0
  %1005 = vmatprep.subr.bf16.mxu0 0
  %1006 = vmatpush1.bf16.msra.mxu0 0
  %1007 = vmatprep.subr.bf16.mxu0 0
  %1008 = vmatpush1.bf16.msra.mxu0 0
  %1009 = vmatprep.subr.bf16.mxu0 0
  %1010 = vmatpush1.bf16.msra.mxu0 0
  %1011 = vmatprep.subr.bf16.mxu0 0
  %1012 = vmatpush1.bf16.msra.mxu0 0
  %1013 = vmatprep.subr.bf16.mxu0 0
  %1014 = vmatpush1.bf16.msra.mxu0 0
  %1015 = vmatprep.subr.bf16.mxu0 0
  %1016 = vmatpush1.bf16.msra.mxu0 0
  %1017 = vmatprep.mubr.bf16.mxu0 0
  %1018 = vmatmul.mubr.bf16.gmra.mrb[0].mxu0 0
  %v1019 = vpop.f32.mrb[0].mxu0
  %v1020 = vadd.f32 0.0, %v1019
  %v1021 = vpop.f32.mrb[0].mxu0
  %v1022 = vpop.f32.mrb[0].mxu0
  %v1023 = vpop.f32.mrb[0].mxu0
  %1024 = vdwg.mxu0
  %v1025 = vadd.f32 %v936, %v1020
  %v1026 = vtanh.pop %v1025
  %v1027 = vld [vmem:[%s428] sm:$0xff]
  %v1028 = vpack.c.bf16 %v1026, %v1026
  %1029 = vmatprep.subr.bf16.mxu0 0
  %1030 = vmatpush1.bf16.msra.mxu0 %v969
  %1031 = vmatprep.subr.bf16.mxu0 0
  %1032 = vmatpush1.bf16.msra.mxu0 %v970
  %1033 = vmatprep.subr.bf16.mxu0 0
  %1034 = vmatpush1.bf16.msra.mxu0 %v971
  %1035 = vmatprep.subr.bf16.mxu0 0
  %1036 = vmatpush1.bf16.msra.mxu0 %v972
  %1037 = vmatprep.subr.bf16.mxu0 0
  %1038 = vmatpush1.bf16.msra.mxu0 %v973
  %1039 = vmatprep.subr.bf16.mxu0 0
  %1040 = vmatpush1.bf16.msra.mxu0 %v974
  %1041 = vmatprep.subr.bf16.mxu0 0
  %1042 = vmatpush1.bf16.msra.mxu0 %v975
  %1043 = vmatprep.subr.bf16.mxu0 0
  %1044 = vmatpush1.bf16.msra.mxu0 %v976
  %1045 = vmatprep.subr.bf16.mxu0 0
  %1046 = vmatpush1.bf16.msra.mxu0 0
  %1047 = vmatprep.subr.bf16.mxu0 0
  %1048 = vmatpush1.bf16.msra.mxu0 0
  %1049 = vmatprep.subr.bf16.mxu0 0
  %1050 = vmatpush1.bf16.msra.mxu0 0
  %1051 = vmatprep.subr.bf16.mxu0 0
  %1052 = vmatpush1.bf16.msra.mxu0 0
  %1053 = vmatprep.subr.bf16.mxu0 0
  %1054 = vmatpush1.bf16.msra.mxu0 0
  %1055 = vmatprep.subr.bf16.mxu0 0
  %1056 = vmatpush1.bf16.msra.mxu0 0
  %1057 = vmatprep.subr.bf16.mxu0 0
  %1058 = vmatpush1.bf16.msra.mxu0 0
  %1059 = vmatprep.subr.bf16.mxu0 0
  %1060 = vmatpush1.bf16.msra.mxu0 0
  %1061 = vmatprep.mubr.bf16.mxu0 0
  %1062 = vmatmul.mubr.bf16.gmra.mrb[0].mxu0 %v1028
  %v1063 = vpop.f32.mrb[0].mxu0
  %v1064 = vadd.f32 0.0, %v1063
  %v1065 = vpop.f32.mrb[0].mxu0
  %v1066 = vpop.f32.mrb[0].mxu0
  %v1067 = vpop.f32.mrb[0].mxu0
  %1068 = vdwg.mxu0
  %v1069 = vadd.f32 %v1027, %v1064
  %v1070 = vtanh.pop %v1069
  %v1071 = vld [vmem:[%s474] sm:$0xff]
  %v1072 = vpack.c.bf16 %v1070, %v1070
  %1073 = vmatprep.subr.bf16.mxu0 0
  %1074 = vmatpush1.bf16.msra.mxu0 %v969
  %1075 = vmatprep.subr.bf16.mxu0 0
  %1076 = vmatpush1.bf16.msra.mxu0 %v970
  %1077 = vmatprep.subr.bf16.mxu0 0
  %1078 = vmatpush1.bf16.msra.mxu0 %v971
  %1079 = vmatprep.subr.bf16.mxu0 0
  %1080 = vmatpush1.bf16.msra.mxu0 %v972
  %1081 = vmatprep.subr.bf16.mxu0 0
  %1082 = vmatpush1.bf16.msra.mxu0 %v973
  %1083 = vmatprep.subr.bf16.mxu0 0
  %1084 = vmatpush1.bf16.msra.mxu0 %v974
  %1085 = vmatprep.subr.bf16.mxu0 0
  %1086 = vmatpush1.bf16.msra.mxu0 %v975
  %1087 = vmatprep.subr.bf16.mxu0 0
  %1088 = vmatpush1.bf16.msra.mxu0 %v976
  %1089 = vmatprep.subr.bf16.mxu0 0
  %1090 = vmatpush1.bf16.msra.mxu0 0
  %1091 = vmatprep.subr.bf16.mxu0 0
  %1092 = vmatpush1.bf16.msra.mxu0 0
  %1093 = vmatprep.subr.bf16.mxu0 0
  %1094 = vmatpush1.bf16.msra.mxu0 0
  %1095 = vmatprep.subr.bf16.mxu0 0
  %1096 = vmatpush1.bf16.msra.mxu0 0
  %1097 = vmatprep.subr.bf16.mxu0 0
  %1098 = vmatpush1.bf16.msra.mxu0 0
  %1099 = vmatprep.subr.bf16.mxu0 0
  %1100 = vmatpush1.bf16.msra.mxu0 0
  %1101 = vmatprep.subr.bf16.mxu0 0
  %1102 = vmatpush1.bf16.msra.mxu0 0
  %1103 = vmatprep.subr.bf16.mxu0 0
  %1104 = vmatpush1.bf16.msra.mxu0 0
  %1105 = vmatprep.mubr.bf16.mxu0 0
  %1106 = vmatmul.mubr.bf16.gmra.mrb[0].mxu0 %v1072
  %v1107 = vpop.f32.mrb[0].mxu0
  %v1108 = vadd.f32 0.0, %v1107
  %v1109 = vpop.f32.mrb[0].mxu0
  %v1110 = vpop.f32.mrb[0].mxu0
  %v1111 = vpop.f32.mrb[0].mxu0
  %1112 = vdwg.mxu0
  %v1113 = vadd.f32 %v1071, %v1108
  %v1114 = vtanh.pop %v1113
  %v1115 = vld [vmem:[%s520] sm:$0xff]
  %v1116 = vpack.c.bf16 %v1114, %v1114
  %1117 = vmatprep.subr.bf16.mxu0 0
  %1118 = vmatpush1.bf16.msra.mxu0 %v969
  %1119 = vmatprep.subr.bf16.mxu0 0
  %1120 = vmatpush1.bf16.msra.mxu0 %v970
  %1121 = vmatprep.subr.bf16.mxu0 0
  %1122 = vmatpush1.bf16.msra.mxu0 %v971
  %1123 = vmatprep.subr.bf16.mxu0 0
  %1124 = vmatpush1.bf16.msra.mxu0 %v972
  %1125 = vmatprep.subr.bf16.mxu0 0
  %1126 = vmatpush1.bf16.msra.mxu0 %v973
  %1127 = vmatprep.subr.bf16.mxu0 0
  %1128 = vmatpush1.bf16.msra.mxu0 %v974
  %1129 = vmatprep.subr.bf16.mxu0 0
  %1130 = vmatpush1.bf16.msra.mxu0 %v975
  %1131 = vmatprep.subr.bf16.mxu0 0
  %1132 = vmatpush1.bf16.msra.mxu0 %v976
  %1133 = vmatprep.subr.bf16.mxu0 0
  %1134 = vmatpush1.bf16.msra.mxu0 0
  %1135 = vmatprep.subr.bf16.mxu0 0
  %1136 = vmatpush1.bf16.msra.mxu0 0
  %1137 = vmatprep.subr.bf16.mxu0 0
  %1138 = vmatpush1.bf16.msra.mxu0 0
  %1139 = vmatprep.subr.bf16.mxu0 0
  %1140 = vmatpush1.bf16.msra.mxu0 0
  %1141 = vmatprep.subr.bf16.mxu0 0
  %1142 = vmatpush1.bf16.msra.mxu0 0
  %1143 = vmatprep.subr.bf16.mxu0 0
  %1144 = vmatpush1.bf16.msra.mxu0 0
  %1145 = vmatprep.subr.bf16.mxu0 0
  %1146 = vmatpush1.bf16.msra.mxu0 0
  %1147 = vmatprep.subr.bf16.mxu0 0
  %1148 = vmatpush1.bf16.msra.mxu0 0
  %1149 = vmatprep.mubr.bf16.mxu0 0
  %1150 = vmatmul.mubr.bf16.gmra.mrb[0].mxu0 %v1116
  %v1151 = vpop.f32.mrb[0].mxu0
  %v1152 = vadd.f32 0.0, %v1151
  %v1153 = vpop.f32.mrb[0].mxu0
  %v1154 = vpop.f32.mrb[0].mxu0
  %v1155 = vpop.f32.mrb[0].mxu0
  %1156 = vdwg.mxu0
  %v1157 = vadd.f32 %v1115, %v1152
  %v1158 = vtanh.pop %v1157
  %v1159 = vld [vmem:[%s566] sm:$0xff]
  %v1160 = vpack.c.bf16 %v1158, %v1158
  %1161 = vmatprep.subr.bf16.mxu0 0
  %1162 = vmatpush1.bf16.msra.mxu0 %v969
  %1163 = vmatprep.subr.bf16.mxu0 0
  %1164 = vmatpush1.bf16.msra.mxu0 %v970
  %1165 = vmatprep.subr.bf16.mxu0 0
  %1166 = vmatpush1.bf16.msra.mxu0 %v971
  %1167 = vmatprep.subr.bf16.mxu0 0
  %1168 = vmatpush1.bf16.msra.mxu0 %v972
  %1169 = vmatprep.subr.bf16.mxu0 0
  %1170 = vmatpush1.bf16.msra.mxu0 %v973
  %1171 = vmatprep.subr.bf16.mxu0 0
  %1172 = vmatpush1.bf16.msra.mxu0 %v974
  %1173 = vmatprep.subr.bf16.mxu0 0
  %1174 = vmatpush1.bf16.msra.mxu0 %v975
  %1175 = vmatprep.subr.bf16.mxu0 0
  %1176 = vmatpush1.bf16.msra.mxu0 %v976
  %1177 = vmatprep.subr.bf16.mxu0 0
  %1178 = vmatpush1.bf16.msra.mxu0 0
  %1179 = vmatprep.subr.bf16.mxu0 0
  %1180 = vmatpush1.bf16.msra.mxu0 0
  %1181 = vmatprep.subr.bf16.mxu0 0
  %1182 = vmatpush1.bf16.msra.mxu0 0
  %1183 = vmatprep.subr.bf16.mxu0 0
  %1184 = vmatpush1.bf16.msra.mxu0 0
  %1185 = vmatprep.subr.bf16.mxu0 0
  %1186 = vmatpush1.bf16.msra.mxu0 0
  %1187 = vmatprep.subr.bf16.mxu0 0
  %1188 = vmatpush1.bf16.msra.mxu0 0
  %1189 = vmatprep.subr.bf16.mxu0 0
  %1190 = vmatpush1.bf16.msra.mxu0 0
  %1191 = vmatprep.subr.bf16.mxu0 0
  %1192 = vmatpush1.bf16.msra.mxu0 0
  %1193 = vmatprep.mubr.bf16.mxu0 0
  %1194 = vmatmul.mubr.bf16.gmra.mrb[0].mxu0 %v1160
  %v1195 = vpop.f32.mrb[0].mxu0
  %v1196 = vadd.f32 0.0, %v1195
  %v1197 = vpop.f32.mrb[0].mxu0
  %v1198 = vpop.f32.mrb[0].mxu0
  %v1199 = vpop.f32.mrb[0].mxu0
  %1200 = vdwg.mxu0
  %v1201 = vadd.f32 %v1159, %v1196
  %v1202 = vtanh.pop %v1201
  %v1203 = vld [vmem:[%s612] sm:$0xff]
  %v1204 = vpack.c.bf16 %v1202, %v1202
  %1205 = vmatprep.subr.bf16.mxu0 0
  %1206 = vmatpush1.bf16.msra.mxu0 %v969
  %1207 = vmatprep.subr.bf16.mxu0 0
  %1208 = vmatpush1.bf16.msra.mxu0 %v970
  %1209 = vmatprep.subr.bf16.mxu0 0
  %1210 = vmatpush1.bf16.msra.mxu0 %v971
  %1211 = vmatprep.subr.bf16.mxu0 0
  %1212 = vmatpush1.bf16.msra.mxu0 %v972
  %1213 = vmatprep.subr.bf16.mxu0 0
  %1214 = vmatpush1.bf16.msra.mxu0 %v973
  %1215 = vmatprep.subr.bf16.mxu0 0
  %1216 = vmatpush1.bf16.msra.mxu0 %v974
  %1217 = vmatprep.subr.bf16.mxu0 0
  %1218 = vmatpush1.bf16.msra.mxu0 %v975
  %1219 = vmatprep.subr.bf16.mxu0 0
  %1220 = vmatpush1.bf16.msra.mxu0 %v976
  %1221 = vmatprep.subr.bf16.mxu0 0
  %1222 = vmatpush1.bf16.msra.mxu0 0
  %1223 = vmatprep.subr.bf16.mxu0 0
  %1224 = vmatpush1.bf16.msra.mxu0 0
  %1225 = vmatprep.subr.bf16.mxu0 0
  %1226 = vmatpush1.bf16.msra.mxu0 0
  %1227 = vmatprep.subr.bf16.mxu0 0
  %1228 = vmatpush1.bf16.msra.mxu0 0
  %1229 = vmatprep.subr.bf16.mxu0 0
  %1230 = vmatpush1.bf16.msra.mxu0 0
  %1231 = vmatprep.subr.bf16.mxu0 0
  %1232 = vmatpush1.bf16.msra.mxu0 0
  %1233 = vmatprep.subr.bf16.mxu0 0
  %1234 = vmatpush1.bf16.msra.mxu0 0
  %1235 = vmatprep.subr.bf16.mxu0 0
  %1236 = vmatpush1.bf16.msra.mxu0 0
  %1237 = vmatprep.mubr.bf16.mxu0 0
  %1238 = vmatmul.mubr.bf16.gmra.mrb[0].mxu0 %v1204
  %v1239 = vpop.f32.mrb[0].mxu0
  %v1240 = vadd.f32 0.0, %v1239
  %v1241 = vpop.f32.mrb[0].mxu0
  %v1242 = vpop.f32.mrb[0].mxu0
  %v1243 = vpop.f32.mrb[0].mxu0
  %1244 = vdwg.mxu0
  %v1245 = vadd.f32 %v1203, %v1240
  %v1246 = vtanh.pop %v1245
  %v1247 = vld [vmem:[%s658] sm:$0xff]
  %v1248 = vpack.c.bf16 %v1246, %v1246
  %1249 = vmatprep.subr.bf16.mxu0 0
  %1250 = vmatpush1.bf16.msra.mxu0 %v969
  %1251 = vmatprep.subr.bf16.mxu0 0
  %1252 = vmatpush1.bf16.msra.mxu0 %v970
  %1253 = vmatprep.subr.bf16.mxu0 0
  %1254 = vmatpush1.bf16.msra.mxu0 %v971
  %1255 = vmatprep.subr.bf16.mxu0 0
  %1256 = vmatpush1.bf16.msra.mxu0 %v972
  %1257 = vmatprep.subr.bf16.mxu0 0
  %1258 = vmatpush1.bf16.msra.mxu0 %v973
  %1259 = vmatprep.subr.bf16.mxu0 0
  %1260 = vmatpush1.bf16.msra.mxu0 %v974
  %1261 = vmatprep.subr.bf16.mxu0 0
  %1262 = vmatpush1.bf16.msra.mxu0 %v975
  %1263 = vmatprep.subr.bf16.mxu0 0
  %1264 = vmatpush1.bf16.msra.mxu0 %v976
  %1265 = vmatprep.subr.bf16.mxu0 0
  %1266 = vmatpush1.bf16.msra.mxu0 0
  %1267 = vmatprep.subr.bf16.mxu0 0
  %1268 = vmatpush1.bf16.msra.mxu0 0
  %1269 = vmatprep.subr.bf16.mxu0 0
  %1270 = vmatpush1.bf16.msra.mxu0 0
  %1271 = vmatprep.subr.bf16.mxu0 0
  %1272 = vmatpush1.bf16.msra.mxu0 0
  %1273 = vmatprep.subr.bf16.mxu0 0
  %1274 = vmatpush1.bf16.msra.mxu0 0
  %1275 = vmatprep.subr.bf16.mxu0 0
  %1276 = vmatpush1.bf16.msra.mxu0 0
  %1277 = vmatprep.subr.bf16.mxu0 0
  %1278 = vmatpush1.bf16.msra.mxu0 0
  %1279 = vmatprep.subr.bf16.mxu0 0
  %1280 = vmatpush1.bf16.msra.mxu0 0
  %1281 = vmatprep.mubr.bf16.mxu0 0
  %1282 = vmatmul.mubr.bf16.gmra.mrb[0].mxu0 %v1248
  %v1283 = vpop.f32.mrb[0].mxu0
  %v1284 = vadd.f32 0.0, %v1283
  %v1285 = vpop.f32.mrb[0].mxu0
  %v1286 = vpop.f32.mrb[0].mxu0
  %v1287 = vpop.f32.mrb[0].mxu0
  %1288 = vdwg.mxu0
  %v1289 = vadd.f32 %v1247, %v1284
  %v1290 = vtanh.pop %v1289
  %v1291 = vld [vmem:[%s704] sm:$0xff]
  %v1292 = vpack.c.bf16 %v1290, %v1290
  %1293 = vmatprep.subr.bf16.mxu0 0
  %1294 = vmatpush1.bf16.msra.mxu0 %v969
  %1295 = vmatprep.subr.bf16.mxu0 0
  %1296 = vmatpush1.bf16.msra.mxu0 %v970
  %1297 = vmatprep.subr.bf16.mxu0 0
  %1298 = vmatpush1.bf16.msra.mxu0 %v971
  %1299 = vmatprep.subr.bf16.mxu0 0
  %1300 = vmatpush1.bf16.msra.mxu0 %v972
  %1301 = vmatprep.subr.bf16.mxu0 0
  %1302 = vmatpush1.bf16.msra.mxu0 %v973
  %1303 = vmatprep.subr.bf16.mxu0 0
  %1304 = vmatpush1.bf16.msra.mxu0 %v974
  %1305 = vmatprep.subr.bf16.mxu0 0
  %1306 = vmatpush1.bf16.msra.mxu0 %v975
  %1307 = vmatprep.subr.bf16.mxu0 0
  %1308 = vmatpush1.bf16.msra.mxu0 %v976
  %1309 = vmatprep.subr.bf16.mxu0 0
  %1310 = vmatpush1.bf16.msra.mxu0 0
  %1311 = vmatprep.subr.bf16.mxu0 0
  %1312 = vmatpush1.bf16.msra.mxu0 0
  %1313 = vmatprep.subr.bf16.mxu0 0
  %1314 = vmatpush1.bf16.msra.mxu0 0
  %1315 = vmatprep.subr.bf16.mxu0 0
  %1316 = vmatpush1.bf16.msra.mxu0 0
  %1317 = vmatprep.subr.bf16.mxu0 0
  %1318 = vmatpush1.bf16.msra.mxu0 0
  %1319 = vmatprep.subr.bf16.mxu0 0
  %1320 = vmatpush1.bf16.msra.mxu0 0
  %1321 = vmatprep.subr.bf16.mxu0 0
  %1322 = vmatpush1.bf16.msra.mxu0 0
  %1323 = vmatprep.subr.bf16.mxu0 0
  %1324 = vmatpush1.bf16.msra.mxu0 0
  %1325 = vmatprep.mubr.bf16.mxu0 0
  %1326 = vmatmul.mubr.bf16.gmra.mrb[0].mxu0 %v1292
  %v1327 = vpop.f32.mrb[0].mxu0
  %v1328 = vadd.f32 0.0, %v1327
  %v1329 = vpop.f32.mrb[0].mxu0
  %v1330 = vpop.f32.mrb[0].mxu0
  %v1331 = vpop.f32.mrb[0].mxu0
  %1332 = vdwg.mxu0
  %v1333 = vadd.f32 %v1291, %v1328
  %v1334 = vtanh.pop %v1333
  %v1335 = vpack.c.bf16 %v1334, %v1334
  %v1336 = vld [vmem:[%s7] sm:$0xf]
  %v1337 = vld [vmem:[%s7 + $0x4] sm:$0xf]
  %v1338 = vld [vmem:[%s7 + $0x8] sm:$0xf]
  %v1339 = vld [vmem:[%s7 + $0xc] sm:$0xf]
  %v1340 = vld [vmem:[%s7 + $0x10] sm:$0xf]
  %v1341 = vld [vmem:[%s7 + $0x14] sm:$0xf]
  %v1342 = vld [vmem:[%s7 + $0x18] sm:$0xf]
  %v1343 = vld [vmem:[%s7 + $0x1c] sm:$0xf]
  %v1344 = vld [vmem:[%s7 + $0x20] sm:$0xf]
  %v1345 = vld [vmem:[%s7 + $0x24] sm:$0xf]
  %v1346 = vld [vmem:[%s7 + $0x28] sm:$0xf]
  %v1347 = vld [vmem:[%s7 + $0x2c] sm:$0xf]
  %v1348 = vld [vmem:[%s7 + $0x30] sm:$0xf]
  %v1349 = vld [vmem:[%s7 + $0x34] sm:$0xf]
  %v1350 = vld [vmem:[%s7 + $0x38] sm:$0xf]
  %v1351 = vld [vmem:[%s7 + $0x3c] sm:$0xf]
  %v1352 = vld [vmem:[%s8] sm:$0x1]
  %v1354 = vlaneseq
  %v1355 = vshrl.u32 %v1354, 7
  %v1356 = vsub.s32 0, %v1355
  %v1357 = vrot.slane %v1352, %v1356
  %v1375 = vunpack.c.l.b16 %v1336
  %v1376 = vunpack.c.l.b16 %v1337
  %v1377 = vunpack.c.l.b16 %v1338
  %v1378 = vunpack.c.l.b16 %v1339
  %v1379 = vunpack.c.l.b16 %v1340
  %v1380 = vunpack.c.l.b16 %v1341
  %v1381 = vunpack.c.l.b16 %v1342
  %v1382 = vunpack.c.l.b16 %v1343
  %v1383 = vunpack.c.l.b16 %v1344
  %v1384 = vunpack.c.l.b16 %v1345
  %v1385 = vunpack.c.l.b16 %v1346
  %v1386 = vunpack.c.l.b16 %v1347
  %v1387 = vunpack.c.l.b16 %v1348
  %v1388 = vunpack.c.l.b16 %v1349
  %v1389 = vunpack.c.l.b16 %v1350
  %v1390 = vunpack.c.l.b16 %v1351
  %v1391 = vpack.c.b16 %v1376, %v1375
  %v1392 = vpack.c.b16 %v1378, %v1377
  %v1393 = vpack.c.b16 %v1380, %v1379
  %v1394 = vpack.c.b16 %v1382, %v1381
  %v1395 = vpack.c.b16 %v1384, %v1383
  %v1396 = vpack.c.b16 %v1386, %v1385
  %v1397 = vpack.c.b16 %v1388, %v1387
  %v1398 = vpack.c.b16 %v1390, %v1389
  %1407 = vmatprep.subr.bf16.mxu0 0
  %1408 = vmatpush1.bf16.msra.mxu0 %v1391
  %1409 = vmatprep.subr.bf16.mxu0 0
  %1410 = vmatpush1.bf16.msra.mxu0 %v1392
  %1411 = vmatprep.subr.bf16.mxu0 0
  %1412 = vmatpush1.bf16.msra.mxu0 %v1393
  %1413 = vmatprep.subr.bf16.mxu0 0
  %1414 = vmatpush1.bf16.msra.mxu0 %v1394
  %1415 = vmatprep.subr.bf16.mxu0 0
  %1416 = vmatpush1.bf16.msra.mxu0 %v1395
  %1417 = vmatprep.subr.bf16.mxu0 0
  %1418 = vmatpush1.bf16.msra.mxu0 %v1396
  %1419 = vmatprep.subr.bf16.mxu0 0
  %1420 = vmatpush1.bf16.msra.mxu0 %v1397
  %1421 = vmatprep.subr.bf16.mxu0 0
  %1422 = vmatpush1.bf16.msra.mxu0 %v1398
  %1423 = vmatprep.subr.bf16.mxu0 0
  %1424 = vmatpush1.bf16.msra.mxu0 0
  %1425 = vmatprep.subr.bf16.mxu0 0
  %1426 = vmatpush1.bf16.msra.mxu0 0
  %1427 = vmatprep.subr.bf16.mxu0 0
  %1428 = vmatpush1.bf16.msra.mxu0 0
  %1429 = vmatprep.subr.bf16.mxu0 0
  %1430 = vmatpush1.bf16.msra.mxu0 0
  %1431 = vmatprep.subr.bf16.mxu0 0
  %1432 = vmatpush1.bf16.msra.mxu0 0
  %1433 = vmatprep.subr.bf16.mxu0 0
  %1434 = vmatpush1.bf16.msra.mxu0 0
  %1435 = vmatprep.subr.bf16.mxu0 0
  %1436 = vmatpush1.bf16.msra.mxu0 0
  %1437 = vmatprep.subr.bf16.mxu0 0
  %1438 = vmatpush1.bf16.msra.mxu0 0
  %1439 = vmatprep.mubr.bf16.mxu0 0
  %1440 = vmatmul.mubr.bf16.gmra.mrb[0].mxu0 %v1335
  %v1441 = vpop.f32.mrb[0].mxu0
  %v1442 = vadd.f32 %v1357, %v1441
  %v1443 = vpop.f32.mrb[0].mxu0
  %v1444 = vpop.f32.mrb[0].mxu0
  %v1445 = vpop.f32.mrb[0].mxu0
  %1446 = vdwg.mxu0
  %1447 = vst [vmem:[%s9] sm:$0xff] %v1442
  // Predicated region
  $region38: #{myrnn_forward.1} parent=0 // pred_check
    _
  $region39: #{myrnn_forward.1} parent=0 // pred_check_branch
    %1449 = sbr.rel (0) target = $region41
  $region40: #{myrnn_forward.1} parent=0 // pred_region
    _
  $region41: #{myrnn_forward.1} parent=0 // pred_fallthru
    _
  // Predicated region
  $region42: #{myrnn_forward.1} parent=0 // pred_check
    _
  $region43: #{myrnn_forward.1} parent=0 // pred_check_branch
    %1451 = sbr.rel (0) target = $region45
  $region44: #{myrnn_forward.1} parent=0 // pred_region
    _
  $region45: #{myrnn_forward.1} parent=0 // pred_fallthru
    _

</llo_original>
